<compile_context>
chip_gen: v5e
topology: v5e:2x2
jax: 0.10.0
libtpu: 0.0.40
codegen_flags: <defaults>
</compile_context>

<pallas_src>
import functools

import jax
import jax.numpy as jnp
from jax.experimental import pallas as pl
from jax.experimental.pallas import tpu as pltpu


def _round_up(x, m):
    return (x + m - 1) // m * m


def _euler_mlp_ode_kernel(unroll,
                          t_ref, dts_ref,            # SMEM (Tp,) f32
                          z0_hbm, w1yT_hbm, w2T_hbm, w3T_hbm,   # pl.ANY (HBM)
                          w1col_ref, b1_ref, b2_ref, b3_ref,    # resident VMEM
                          out_ref,                    # (U, Bp, Dp) output block
                          state_ref,                  # (Bp, Dp) f32 scratch
                          w1yT_v, w2T_v, w3T_v):      # single-buffered weights
    i = pl.program_id(0)

    # One-time load of all resident data: weights HBM -> VMEM scratch (single
    # buffer each) and the initial state directly into the Euler-state scratch.
    @pl.when(i == 0)
    def _load_residents():
        pltpu.sync_copy(z0_hbm, state_ref)
        pltpu.sync_copy(w1yT_hbm, w1yT_v)
        pltpu.sync_copy(w2T_hbm, w2T_v)
        pltpu.sync_copy(w3T_hbm, w3T_v)

    cdt = w1yT_v.dtype  # weight storage/compute dtype (bf16 default, or f32)

    for u in range(unroll):                      # static unroll of U steps
        g = i * unroll + u                       # global time index
        # Emit trajectory sample g (state after g Euler steps).
        out_ref[u] = state_ref[...].astype(out_ref.dtype)

        # RHS evaluation f(t_g, y).  dts[g] = 0 for padded steps, so the state
        # is unchanged there (wasted compute only in the final block).
        y = state_ref[...].astype(cdt)
        tb = t_ref[g] * w1col_ref[...] + b1_ref[...]            # (1, Hp) VPU FMA
        h = jnp.tanh(
            jnp.dot(y, w1yT_v[...], preferred_element_type=jnp.float32) + tb)
        h = jnp.tanh(
            jnp.dot(h.astype(cdt), w2T_v[...],
                    preferred_element_type=jnp.float32) + b2_ref[...])
        f = (jnp.dot(h.astype(cdt), w3T_v[...],
                     preferred_element_type=jnp.float32) + b3_ref[...])
        # Euler update in f32 (padded Dp lanes of f are exactly zero).
        state_ref[...] = state_ref[...] + dts_ref[g] * f


def prepare_params(W1, b1, W2, b2, W3, b3, state_dim, param_dtype=jnp.bfloat16):
    """One-time (model init) conversion of torch nn.Linear weights into kernel
    layout: t-column split, pre-transposed, zero-padded to lane multiples,
    cast to bf16 by default.  W*: (out_features, in_features)."""
    H = W1.shape[0]
    D = state_dim  # = (input_dim - 1) + augment_dim
    assert W1.shape == (H, D + 1) and b1.shape == (H,)
    assert W2.shape == (H, H) and b2.shape == (H,)
    assert W3.shape == (D + 1, H) and b3.shape == (D + 1,)

    Dp = _round_up(D, 128)
    Hp = _round_up(H, 128)

    def pad2(a, rows, cols):
        return jnp.pad(a, ((0, rows - a.shape[0]), (0, cols - a.shape[1])))

    return dict(
        w1_col=jnp.pad(W1[:, 0], (0, Hp - H)).astype(jnp.float32).reshape(1, Hp),
        b1=jnp.pad(b1, (0, Hp - H)).astype(jnp.float32).reshape(1, Hp),
        w1yT=pad2(W1[:, 1:].T, Dp, Hp).astype(param_dtype),        # (Dp, Hp)
        w2T=pad2(W2.T, Hp, Hp).astype(param_dtype),                # (Hp, Hp)
        b2=jnp.pad(b2, (0, Hp - H)).astype(jnp.float32).reshape(1, Hp),
        w3T=pad2(W3[:D, :].T, Hp, Dp).astype(param_dtype),         # (Hp, Dp)
        b3=jnp.pad(b3[:D], (0, Dp - D)).astype(jnp.float32).reshape(1, Dp),
    )


@functools.partial(jax.jit,
                   static_argnames=("data_dim", "augment_dim", "unroll"))
def augmented_neural_ode_forward(y0, t, params, *, data_dim, augment_dim,
                                 unroll=4):
    """AugmentedNeuralODE.forward (use_second_order=False, method='euler')."""
    B = y0.shape[0]
    T = t.shape[0]
    Dp, Hp = params["w1yT"].shape
    pdt = params["w1yT"].dtype

    # bf16 activations pack 16 rows per vreg -> pad batch to 16 sublanes.
    sub = 16 if pdt == jnp.bfloat16 else 8
    Bp = _round_up(max(B, sub), sub)

    U = max(1, min(int(unroll), T))
    n_blocks = -(-T // U)
    Tp = n_blocks * U

    # Module prologue: z0 = cat([y0, zeros(B, augment_dim)]) — plus zero pad.
    z0 = jnp.zeros((Bp, Dp), jnp.float32).at[:B, :data_dim].set(
        y0.astype(jnp.float32))

    t32 = t.astype(jnp.float32)
    if Tp > T:
        t_pad = jnp.concatenate([t32, jnp.full((Tp - T,), t32[-1], jnp.float32)])
    else:
        t_pad = t32
    dts = jnp.zeros((Tp,), jnp.float32).at[:T - 1].set(t32[1:] - t32[:-1])

    # Generation-aware VMEM budget (weights are SINGLE-buffered scratch now).
    itemsize = jnp.dtype(pdt).itemsize
    resident = (Dp * Hp + Hp * Hp + Hp * Dp) * itemsize
    state_bytes = Bp * Dp * 4
    out_bytes = 2 * U * Bp * Dp * 4                 # double-buffered out block
    act_bytes = 4 * Bp * Hp * 4                     # activation headroom
    small_bytes = 2 * 2 * (3 * Hp + Dp) * 4         # resident bias vectors
    try:
        cap = int(pltpu.get_tpu_info().vmem_capacity_bytes)
    except Exception:  # conservative fallback (v7x has 64 MiB per TC)
        cap = 64 * 1024 * 1024
    need = resident + state_bytes + out_bytes + act_bytes + small_bytes + (8 << 20)
    vmem_limit = int(min(max(need, 32 << 20), int(0.9 * cap)))

    kernel = functools.partial(_euler_mlp_ode_kernel, U)

    traj = pl.pallas_call(
        kernel,
        out_shape=jax.ShapeDtypeStruct((Tp, Bp, Dp), jnp.float32),
        grid_spec=pltpu.PrefetchScalarGridSpec(
            num_scalar_prefetch=0,
            grid=(n_blocks,),
            in_specs=[
                pl.BlockSpec(memory_space=pltpu.MemorySpace.SMEM),  # t
                pl.BlockSpec(memory_space=pltpu.MemorySpace.SMEM),  # dts
                pl.BlockSpec(memory_space=pl.ANY),                  # z0   (HBM)
                pl.BlockSpec(memory_space=pl.ANY),                  # w1yT (HBM)
                pl.BlockSpec(memory_space=pl.ANY),                  # w2T  (HBM)
                pl.BlockSpec(memory_space=pl.ANY),                  # w3T  (HBM)
                pl.BlockSpec((1, Hp), lambda i: (0, 0)),            # w1_col
                pl.BlockSpec((1, Hp), lambda i: (0, 0)),            # b1
                pl.BlockSpec((1, Hp), lambda i: (0, 0)),            # b2
                pl.BlockSpec((1, Dp), lambda i: (0, 0)),            # b3
            ],
            out_specs=pl.BlockSpec((U, Bp, Dp), lambda i: (i, 0, 0)),
            scratch_shapes=[
                pltpu.VMEM((Bp, Dp), jnp.float32),   # Euler state (carried)
                pltpu.VMEM((Dp, Hp), pdt),           # w1yT (single buffer)
                pltpu.VMEM((Hp, Hp), pdt),           # w2T  (single buffer)
                pltpu.VMEM((Hp, Dp), pdt),           # w3T  (single buffer)
            ],
        ),
        compiler_params=pltpu.CompilerParams(
            dimension_semantics=("arbitrary",),      # sequential time recurrence
            vmem_limit_bytes=vmem_limit,
        ),
    )(t_pad, dts, z0, params["w1yT"], params["w2T"], params["w3T"],
      params["w1_col"], params["b1"], params["b2"], params["b3"])

    # Module epilogue: drop augment dims / padding, then `.view(-1, T, d)`
    # (faithfully reproduces the torch view's time/batch interleaving).
    out = traj[:T, :B, :data_dim]
    return out.reshape(-1, T, data_dim)


def _reference_forward(y0, t, raw_params, data_dim, augment_dim):
    """Pure-JAX mirror of the torch module (f32, highest matmul precision)."""
    W1, b1, W2, b2, W3, b3 = raw_params
    B = y0.shape[0]
    D = data_dim + augment_dim
    hp = jax.lax.Precision.HIGHEST
    z = jnp.concatenate([y0, jnp.zeros((B, augment_dim), y0.dtype)], axis=1)

    def func(tt, y):
        t_vec = jnp.ones((y.shape[0], 1), y.dtype) * tt
        ty = jnp.concatenate([t_vec, y], axis=1)
        h = jnp.tanh(jnp.dot(ty, W1.T, precision=hp) + b1)
        h = jnp.tanh(jnp.dot(h, W2.T, precision=hp) + b2)
        out = jnp.dot(h, W3.T, precision=hp) + b3
        return out[:, :D]

    ys = [z]
    for i in range(t.shape[0] - 1):
        z = z + func(t[i], z) * (t[i + 1] - t[i])   # odeint(..., method='euler')
        ys.append(z)
    traj = jnp.stack(ys)                            # (T, B, D)
    return traj[:, :, :data_dim].reshape(-1, t.shape[0], data_dim)


if __name__ == "__main__":
    # Small shapes consistent with the module structure
    # (real model: input_dim-1 = 50*50 = 2500, augment_dim = 10, hidden = 2048).
    DATA_DIM = 118        # input_dim - 1 (flattened shallow-water field)
    AUGMENT_DIM = 10      # -> ODE state dim D = 128
    HIDDEN_DIM = 256
    BATCH = 4
    T_POINTS = 8

    key = jax.random.PRNGKey(0)
    ks = jax.random.split(key, 7)
    D = DATA_DIM + AUGMENT_DIM

    def linear_init(kw, kb, fan_out, fan_in):
        bound = 1.0 / jnp.sqrt(jnp.float32(fan_in))
        W = jax.random.uniform(kw, (fan_out, fan_in), jnp.float32, -bound, bound)
        b = jax.random.uniform(kb, (fan_out,), jnp.float32, -bound, bound)
        return W, b

    W1, b1 = linear_init(ks[0], ks[1], HIDDEN_DIM, D + 1)
    W2, b2 = linear_init(ks[2], ks[3], HIDDEN_DIM, HIDDEN_DIM)
    W3, b3 = linear_init(ks[4], ks[5], D + 1, HIDDEN_DIM)

    y0 = jax.random.normal(ks[6], (BATCH, DATA_DIM), jnp.float32)
    t = jnp.linspace(0.0, 1.0, T_POINTS).astype(jnp.float32)

    ref = _reference_forward(y0, t, (W1, b1, W2, b2, W3, b3),
                             DATA_DIM, AUGMENT_DIM)

    # --- default path: bf16 resident weights (halves the weight stream) ---
    params16 = prepare_params(W1, b1, W2, b2, W3, b3, D)   # bf16 default
    out16 = augmented_neural_ode_forward(y0, t, params16,
                                         data_dim=DATA_DIM,
                                         augment_dim=AUGMENT_DIM)
    out16 = jax.block_until_ready(out16)
    assert out16.shape == ref.shape and out16.dtype == jnp.float32
    # NOTE: bf16 Euler error compounds with horizon; tolerance validated at T=8.
    assert jnp.allclose(out16, ref, rtol=5e-2, atol=5e-2), "bf16 kernel mismatch"

    # --- f32 resident-weight path (reference precision) ---
    params32 = prepare_params(W1, b1, W2, b2, W3, b3, D,
                              param_dtype=jnp.float32)
    out32 = augmented_neural_ode_forward(y0, t, params32,
                                         data_dim=DATA_DIM,
                                         augment_dim=AUGMENT_DIM)
    out32 = jax.block_until_ready(out32)
    assert jnp.allclose(out32, ref, rtol=2e-3, atol=2e-3), "f32 kernel mismatch"

    print("KERNEL_OK")
</pallas_src>

<mosaic_0001>
module attributes {stable_mosaic.version = 11 : i64} {
  func.func @_euler_mlp_ode_kernel(%arg0: i32, %arg1: memref<8xf32, #tpu.memory_space<smem>>, %arg2: memref<8xf32, #tpu.memory_space<smem>>, %arg3: memref<16x128xf32, #tpu.memory_space<any>>, %arg4: memref<128x256xbf16, #tpu.memory_space<any>>, %arg5: memref<256x256xbf16, #tpu.memory_space<any>>, %arg6: memref<256x128xbf16, #tpu.memory_space<any>>, %arg7: memref<1x256xf32, #tpu.memory_space<vmem>>, %arg8: memref<1x256xf32, #tpu.memory_space<vmem>>, %arg9: memref<1x256xf32, #tpu.memory_space<vmem>>, %arg10: memref<1x128xf32, #tpu.memory_space<vmem>>, %arg11: memref<4x16x128xf32, #tpu.memory_space<vmem>>, %arg12: memref<16x128xf32, #tpu.memory_space<vmem>>, %arg13: memref<128x256xbf16, #tpu.memory_space<vmem>>, %arg14: memref<256x256xbf16, #tpu.memory_space<vmem>>, %arg15: memref<256x128xbf16, #tpu.memory_space<vmem>>) attributes {dimension_semantics = [#tpu.dimension_semantics<arbitrary>], iteration_bounds = array<i64: 2>, scalar_prefetch = 0 : i64, scratch_operands = 4 : i64, tpu.core_type = #tpu.core_type<tc>, window_params = [{transform_indices = @transform_0, window_bounds = array<i64: 8>}, {transform_indices = @transform_1, window_bounds = array<i64: 8>}, {}, {}, {}, {}, {pipeline_mode = #tpu.pipeline_mode<synchronous>, transform_indices = @transform_6, window_bounds = array<i64: 1, 256>}, {pipeline_mode = #tpu.pipeline_mode<synchronous>, transform_indices = @transform_7, window_bounds = array<i64: 1, 256>}, {pipeline_mode = #tpu.pipeline_mode<synchronous>, transform_indices = @transform_8, window_bounds = array<i64: 1, 256>}, {pipeline_mode = #tpu.pipeline_mode<synchronous>, transform_indices = @transform_9, window_bounds = array<i64: 1, 128>}, {transform_indices = @transform_10, window_bounds = array<i64: 4, 16, 128>}]} {
    %c0_i32 = arith.constant 0 : i32
    %0 = arith.cmpi eq, %arg0, %c0_i32 : i32
    %1 = arith.extui %0 : i1 to i32
    %c0_i32_0 = arith.constant 0 : i32
    %2 = arith.cmpi ne, %1, %c0_i32_0 : i32
    scf.if %2 {
      "tpu.region"() ({
        %163 = tpu.sem_alloc : memref<!tpu.dma_semaphore, #tpu.memory_space<semaphore_mem>>
        tpu.enqueue_dma source(%arg3 : memref<16x128xf32, #tpu.memory_space<any>>) target(%arg12 : memref<16x128xf32, #tpu.memory_space<vmem>>) target_semaphore(%163 : memref<!tpu.dma_semaphore, #tpu.memory_space<semaphore_mem>>)
        tpu.wait_dma2 semaphore(%163 : memref<!tpu.dma_semaphore, #tpu.memory_space<semaphore_mem>>) src(%arg3 : memref<16x128xf32, #tpu.memory_space<any>>) dst(%arg12 : memref<16x128xf32, #tpu.memory_space<vmem>>)
        tpu.yield
      }) : () -> ()
      "tpu.region"() ({
        %163 = tpu.sem_alloc : memref<!tpu.dma_semaphore, #tpu.memory_space<semaphore_mem>>
        tpu.enqueue_dma source(%arg4 : memref<128x256xbf16, #tpu.memory_space<any>>) target(%arg13 : memref<128x256xbf16, #tpu.memory_space<vmem>>) target_semaphore(%163 : memref<!tpu.dma_semaphore, #tpu.memory_space<semaphore_mem>>)
        tpu.wait_dma2 semaphore(%163 : memref<!tpu.dma_semaphore, #tpu.memory_space<semaphore_mem>>) src(%arg4 : memref<128x256xbf16, #tpu.memory_space<any>>) dst(%arg13 : memref<128x256xbf16, #tpu.memory_space<vmem>>)
        tpu.yield
      }) : () -> ()
      "tpu.region"() ({
        %163 = tpu.sem_alloc : memref<!tpu.dma_semaphore, #tpu.memory_space<semaphore_mem>>
        tpu.enqueue_dma source(%arg5 : memref<256x256xbf16, #tpu.memory_space<any>>) target(%arg14 : memref<256x256xbf16, #tpu.memory_space<vmem>>) target_semaphore(%163 : memref<!tpu.dma_semaphore, #tpu.memory_space<semaphore_mem>>)
        tpu.wait_dma2 semaphore(%163 : memref<!tpu.dma_semaphore, #tpu.memory_space<semaphore_mem>>) src(%arg5 : memref<256x256xbf16, #tpu.memory_space<any>>) dst(%arg14 : memref<256x256xbf16, #tpu.memory_space<vmem>>)
        tpu.yield
      }) : () -> ()
      "tpu.region"() ({
        %163 = tpu.sem_alloc : memref<!tpu.dma_semaphore, #tpu.memory_space<semaphore_mem>>
        tpu.enqueue_dma source(%arg6 : memref<256x128xbf16, #tpu.memory_space<any>>) target(%arg15 : memref<256x128xbf16, #tpu.memory_space<vmem>>) target_semaphore(%163 : memref<!tpu.dma_semaphore, #tpu.memory_space<semaphore_mem>>)
        tpu.wait_dma2 semaphore(%163 : memref<!tpu.dma_semaphore, #tpu.memory_space<semaphore_mem>>) src(%arg6 : memref<256x128xbf16, #tpu.memory_space<any>>) dst(%arg15 : memref<256x128xbf16, #tpu.memory_space<vmem>>)
        tpu.yield
      }) : () -> ()
    } else {
    }
    %c4_i32 = arith.constant 4 : i32
    %3 = arith.muli %arg0, %c4_i32 : i32
    %c0_i32_1 = arith.constant 0 : i32
    %4 = arith.addi %3, %c0_i32_1 : i32
    %c0 = arith.constant 0 : index
    %c0_2 = arith.constant 0 : index
    %5 = vector.load %arg12[%c0, %c0_2] : memref<16x128xf32, #tpu.memory_space<vmem>>, vector<16x128xf32>
    %c0_3 = arith.constant 0 : index
    %c0_4 = arith.constant 0 : index
    %c0_5 = arith.constant 0 : index
    %6 = vector.load %arg11[%c0_3, %c0_4, %c0_5] : memref<4x16x128xf32, #tpu.memory_space<vmem>>, vector<1x16x128xf32>
    %7 = vector.shape_cast %6 : vector<1x16x128xf32> to vector<16x128xf32>
    %8 = vector.shape_cast %5 : vector<16x128xf32> to vector<1x16x128xf32>
    tpu.vector_store %arg11[%c0_3, %c0_4, %c0_5], %8 {strides = array<i32>} : memref<4x16x128xf32, #tpu.memory_space<vmem>>, vector<1x16x128xf32>,
    %c0_6 = arith.constant 0 : index
    %c0_7 = arith.constant 0 : index
    %9 = vector.load %arg12[%c0_6, %c0_7] : memref<16x128xf32, #tpu.memory_space<vmem>>, vector<16x128xf32>
    %10 = arith.truncf %9 : vector<16x128xf32> to vector<16x128xbf16>
    %11 = arith.index_cast %4 : i32 to index
    %12 = memref.load %arg1[%11] : memref<8xf32, #tpu.memory_space<smem>>
    %c0_8 = arith.constant 0 : index
    %c0_9 = arith.constant 0 : index
    %13 = vector.load %arg7[%c0_8, %c0_9] : memref<1x256xf32, #tpu.memory_space<vmem>>, vector<1x256xf32>
    %14 = vector.broadcast %12 : f32 to vector<1x256xf32>
    %15 = arith.mulf %14, %13 : vector<1x256xf32>
    %c0_10 = arith.constant 0 : index
    %c0_11 = arith.constant 0 : index
    %16 = vector.load %arg8[%c0_10, %c0_11] : memref<1x256xf32, #tpu.memory_space<vmem>>, vector<1x256xf32>
    %17 = arith.addf %15, %16 : vector<1x256xf32>
    %c0_12 = arith.constant 0 : index
    %c0_13 = arith.constant 0 : index
    %18 = vector.load %arg13[%c0_12, %c0_13] : memref<128x256xbf16, #tpu.memory_space<vmem>>, vector<128x256xbf16>
    %cst = arith.constant dense<0.000000e+00> : vector<16x256xf32>
    %19 = tpu.matmul %10, %18, %cst {dimension_numbers = #tpu.dot_dimension_numbers<[1], [0], [0], [1], [0, 0, 1, 1], [], []>} : vector<16x128xbf16>, vector<128x256xbf16>, vector<16x256xf32> -> vector<16x256xf32>
    %20 = vector.broadcast %17 : vector<1x256xf32> to vector<16x256xf32>
    %21 = arith.addf %19, %20 : vector<16x256xf32>
    %22 = math.tanh %21 : vector<16x256xf32>
    %23 = arith.truncf %22 : vector<16x256xf32> to vector<16x256xbf16>
    %c0_14 = arith.constant 0 : index
    %c0_15 = arith.constant 0 : index
    %24 = vector.load %arg14[%c0_14, %c0_15] : memref<256x256xbf16, #tpu.memory_space<vmem>>, vector<256x256xbf16>
    %cst_16 = arith.constant dense<0.000000e+00> : vector<16x256xf32>
    %25 = tpu.matmul %23, %24, %cst_16 {dimension_numbers = #tpu.dot_dimension_numbers<[1], [0], [0], [1], [0, 0, 1, 1], [], []>} : vector<16x256xbf16>, vector<256x256xbf16>, vector<16x256xf32> -> vector<16x256xf32>
    %c0_17 = arith.constant 0 : index
    %c0_18 = arith.constant 0 : index
    %26 = vector.load %arg9[%c0_17, %c0_18] : memref<1x256xf32, #tpu.memory_space<vmem>>, vector<1x256xf32>
    %27 = vector.broadcast %26 : vector<1x256xf32> to vector<16x256xf32>
    %28 = arith.addf %25, %27 : vector<16x256xf32>
    %29 = math.tanh %28 : vector<16x256xf32>
    %30 = arith.truncf %29 : vector<16x256xf32> to vector<16x256xbf16>
    %c0_19 = arith.constant 0 : index
    %c0_20 = arith.constant 0 : index
    %31 = vector.load %arg15[%c0_19, %c0_20] : memref<256x128xbf16, #tpu.memory_space<vmem>>, vector<256x128xbf16>
    %cst_21 = arith.constant dense<0.000000e+00> : vector<16x128xf32>
    %32 = tpu.matmul %30, %31, %cst_21 {dimension_numbers = #tpu.dot_dimension_numbers<[1], [0], [0], [1], [0, 0, 1, 1], [], []>} : vector<16x256xbf16>, vector<256x128xbf16>, vector<16x128xf32> -> vector<16x128xf32>
    %c0_22 = arith.constant 0 : index
    %c0_23 = arith.constant 0 : index
    %33 = vector.load %arg10[%c0_22, %c0_23] : memref<1x128xf32, #tpu.memory_space<vmem>>, vector<1x128xf32>
    %34 = vector.broadcast %33 : vector<1x128xf32> to vector<16x128xf32>
    %35 = arith.addf %32, %34 : vector<16x128xf32>
    %c0_24 = arith.constant 0 : index
    %c0_25 = arith.constant 0 : index
    %36 = vector.load %arg12[%c0_24, %c0_25] : memref<16x128xf32, #tpu.memory_space<vmem>>, vector<16x128xf32>
    %37 = arith.index_cast %4 : i32 to index
    %38 = memref.load %arg2[%37] : memref<8xf32, #tpu.memory_space<smem>>
    %39 = vector.broadcast %38 : f32 to vector<16x128xf32>
    %40 = arith.mulf %39, %35 : vector<16x128xf32>
    %41 = arith.addf %36, %40 : vector<16x128xf32>
    %c0_26 = arith.constant 0 : index
    %c0_27 = arith.constant 0 : index
    %42 = vector.load %arg12[%c0_26, %c0_27] : memref<16x128xf32, #tpu.memory_space<vmem>>, vector<16x128xf32>
    tpu.vector_store %arg12[%c0_26, %c0_27], %41 {strides = array<i32>} : memref<16x128xf32, #tpu.memory_space<vmem>>, vector<16x128xf32>,
    %c4_i32_28 = arith.constant 4 : i32
    %43 = arith.muli %arg0, %c4_i32_28 : i32
    %c1_i32 = arith.constant 1 : i32
    %44 = arith.addi %43, %c1_i32 : i32
    %c0_29 = arith.constant 0 : index
    %c0_30 = arith.constant 0 : index
    %45 = vector.load %arg12[%c0_29, %c0_30] : memref<16x128xf32, #tpu.memory_space<vmem>>, vector<16x128xf32>
    %c1 = arith.constant 1 : index
    %c0_31 = arith.constant 0 : index
    %c0_32 = arith.constant 0 : index
    %46 = vector.load %arg11[%c1, %c0_31, %c0_32] : memref<4x16x128xf32, #tpu.memory_space<vmem>>, vector<1x16x128xf32>
    %47 = vector.shape_cast %46 : vector<1x16x128xf32> to vector<16x128xf32>
    %48 = vector.shape_cast %45 : vector<16x128xf32> to vector<1x16x128xf32>
    tpu.vector_store %arg11[%c1, %c0_31, %c0_32], %48 {strides = array<i32>} : memref<4x16x128xf32, #tpu.memory_space<vmem>>, vector<1x16x128xf32>,
    %c0_33 = arith.constant 0 : index
    %c0_34 = arith.constant 0 : index
    %49 = vector.load %arg12[%c0_33, %c0_34] : memref<16x128xf32, #tpu.memory_space<vmem>>, vector<16x128xf32>
    %50 = arith.truncf %49 : vector<16x128xf32> to vector<16x128xbf16>
    %51 = arith.index_cast %44 : i32 to index
    %52 = memref.load %arg1[%51] : memref<8xf32, #tpu.memory_space<smem>>
    %c0_35 = arith.constant 0 : index
    %c0_36 = arith.constant 0 : index
    %53 = vector.load %arg7[%c0_35, %c0_36] : memref<1x256xf32, #tpu.memory_space<vmem>>, vector<1x256xf32>
    %54 = vector.broadcast %52 : f32 to vector<1x256xf32>
    %55 = arith.mulf %54, %53 : vector<1x256xf32>
    %c0_37 = arith.constant 0 : index
    %c0_38 = arith.constant 0 : index
    %56 = vector.load %arg8[%c0_37, %c0_38] : memref<1x256xf32, #tpu.memory_space<vmem>>, vector<1x256xf32>
    %57 = arith.addf %55, %56 : vector<1x256xf32>
    %c0_39 = arith.constant 0 : index
    %c0_40 = arith.constant 0 : index
    %58 = vector.load %arg13[%c0_39, %c0_40] : memref<128x256xbf16, #tpu.memory_space<vmem>>, vector<128x256xbf16>
    %cst_41 = arith.constant dense<0.000000e+00> : vector<16x256xf32>
    %59 = tpu.matmul %50, %58, %cst_41 {dimension_numbers = #tpu.dot_dimension_numbers<[1], [0], [0], [1], [0, 0, 1, 1], [], []>} : vector<16x128xbf16>, vector<128x256xbf16>, vector<16x256xf32> -> vector<16x256xf32>
    %60 = vector.broadcast %57 : vector<1x256xf32> to vector<16x256xf32>
    %61 = arith.addf %59, %60 : vector<16x256xf32>
    %62 = math.tanh %61 : vector<16x256xf32>
    %63 = arith.truncf %62 : vector<16x256xf32> to vector<16x256xbf16>
    %c0_42 = arith.constant 0 : index
    %c0_43 = arith.constant 0 : index
    %64 = vector.load %arg14[%c0_42, %c0_43] : memref<256x256xbf16, #tpu.memory_space<vmem>>, vector<256x256xbf16>
    %cst_44 = arith.constant dense<0.000000e+00> : vector<16x256xf32>
    %65 = tpu.matmul %63, %64, %cst_44 {dimension_numbers = #tpu.dot_dimension_numbers<[1], [0], [0], [1], [0, 0, 1, 1], [], []>} : vector<16x256xbf16>, vector<256x256xbf16>, vector<16x256xf32> -> vector<16x256xf32>
    %c0_45 = arith.constant 0 : index
    %c0_46 = arith.constant 0 : index
    %66 = vector.load %arg9[%c0_45, %c0_46] : memref<1x256xf32, #tpu.memory_space<vmem>>, vector<1x256xf32>
    %67 = vector.broadcast %66 : vector<1x256xf32> to vector<16x256xf32>
    %68 = arith.addf %65, %67 : vector<16x256xf32>
    %69 = math.tanh %68 : vector<16x256xf32>
    %70 = arith.truncf %69 : vector<16x256xf32> to vector<16x256xbf16>
    %c0_47 = arith.constant 0 : index
    %c0_48 = arith.constant 0 : index
    %71 = vector.load %arg15[%c0_47, %c0_48] : memref<256x128xbf16, #tpu.memory_space<vmem>>, vector<256x128xbf16>
    %cst_49 = arith.constant dense<0.000000e+00> : vector<16x128xf32>
    %72 = tpu.matmul %70, %71, %cst_49 {dimension_numbers = #tpu.dot_dimension_numbers<[1], [0], [0], [1], [0, 0, 1, 1], [], []>} : vector<16x256xbf16>, vector<256x128xbf16>, vector<16x128xf32> -> vector<16x128xf32>
    %c0_50 = arith.constant 0 : index
    %c0_51 = arith.constant 0 : index
    %73 = vector.load %arg10[%c0_50, %c0_51] : memref<1x128xf32, #tpu.memory_space<vmem>>, vector<1x128xf32>
    %74 = vector.broadcast %73 : vector<1x128xf32> to vector<16x128xf32>
    %75 = arith.addf %72, %74 : vector<16x128xf32>
    %c0_52 = arith.constant 0 : index
    %c0_53 = arith.constant 0 : index
    %76 = vector.load %arg12[%c0_52, %c0_53] : memref<16x128xf32, #tpu.memory_space<vmem>>, vector<16x128xf32>
    %77 = arith.index_cast %44 : i32 to index
    %78 = memref.load %arg2[%77] : memref<8xf32, #tpu.memory_space<smem>>
    %79 = vector.broadcast %78 : f32 to vector<16x128xf32>
    %80 = arith.mulf %79, %75 : vector<16x128xf32>
    %81 = arith.addf %76, %80 : vector<16x128xf32>
    %c0_54 = arith.constant 0 : index
    %c0_55 = arith.constant 0 : index
    %82 = vector.load %arg12[%c0_54, %c0_55] : memref<16x128xf32, #tpu.memory_space<vmem>>, vector<16x128xf32>
    tpu.vector_store %arg12[%c0_54, %c0_55], %81 {strides = array<i32>} : memref<16x128xf32, #tpu.memory_space<vmem>>, vector<16x128xf32>,
    %c4_i32_56 = arith.constant 4 : i32
    %83 = arith.muli %arg0, %c4_i32_56 : i32
    %c2_i32 = arith.constant 2 : i32
    %84 = arith.addi %83, %c2_i32 : i32
    %c0_57 = arith.constant 0 : index
    %c0_58 = arith.constant 0 : index
    %85 = vector.load %arg12[%c0_57, %c0_58] : memref<16x128xf32, #tpu.memory_space<vmem>>, vector<16x128xf32>
    %c2 = arith.constant 2 : index
    %c0_59 = arith.constant 0 : index
    %c0_60 = arith.constant 0 : index
    %86 = vector.load %arg11[%c2, %c0_59, %c0_60] : memref<4x16x128xf32, #tpu.memory_space<vmem>>, vector<1x16x128xf32>
    %87 = vector.shape_cast %86 : vector<1x16x128xf32> to vector<16x128xf32>
    %88 = vector.shape_cast %85 : vector<16x128xf32> to vector<1x16x128xf32>
    tpu.vector_store %arg11[%c2, %c0_59, %c0_60], %88 {strides = array<i32>} : memref<4x16x128xf32, #tpu.memory_space<vmem>>, vector<1x16x128xf32>,
    %c0_61 = arith.constant 0 : index
    %c0_62 = arith.constant 0 : index
    %89 = vector.load %arg12[%c0_61, %c0_62] : memref<16x128xf32, #tpu.memory_space<vmem>>, vector<16x128xf32>
    %90 = arith.truncf %89 : vector<16x128xf32> to vector<16x128xbf16>
    %91 = arith.index_cast %84 : i32 to index
    %92 = memref.load %arg1[%91] : memref<8xf32, #tpu.memory_space<smem>>
    %c0_63 = arith.constant 0 : index
    %c0_64 = arith.constant 0 : index
    %93 = vector.load %arg7[%c0_63, %c0_64] : memref<1x256xf32, #tpu.memory_space<vmem>>, vector<1x256xf32>
    %94 = vector.broadcast %92 : f32 to vector<1x256xf32>
    %95 = arith.mulf %94, %93 : vector<1x256xf32>
    %c0_65 = arith.constant 0 : index
    %c0_66 = arith.constant 0 : index
    %96 = vector.load %arg8[%c0_65, %c0_66] : memref<1x256xf32, #tpu.memory_space<vmem>>, vector<1x256xf32>
    %97 = arith.addf %95, %96 : vector<1x256xf32>
    %c0_67 = arith.constant 0 : index
    %c0_68 = arith.constant 0 : index
    %98 = vector.load %arg13[%c0_67, %c0_68] : memref<128x256xbf16, #tpu.memory_space<vmem>>, vector<128x256xbf16>
    %cst_69 = arith.constant dense<0.000000e+00> : vector<16x256xf32>
    %99 = tpu.matmul %90, %98, %cst_69 {dimension_numbers = #tpu.dot_dimension_numbers<[1], [0], [0], [1], [0, 0, 1, 1], [], []>} : vector<16x128xbf16>, vector<128x256xbf16>, vector<16x256xf32> -> vector<16x256xf32>
    %100 = vector.broadcast %97 : vector<1x256xf32> to vector<16x256xf32>
    %101 = arith.addf %99, %100 : vector<16x256xf32>
    %102 = math.tanh %101 : vector<16x256xf32>
    %103 = arith.truncf %102 : vector<16x256xf32> to vector<16x256xbf16>
    %c0_70 = arith.constant 0 : index
    %c0_71 = arith.constant 0 : index
    %104 = vector.load %arg14[%c0_70, %c0_71] : memref<256x256xbf16, #tpu.memory_space<vmem>>, vector<256x256xbf16>
    %cst_72 = arith.constant dense<0.000000e+00> : vector<16x256xf32>
    %105 = tpu.matmul %103, %104, %cst_72 {dimension_numbers = #tpu.dot_dimension_numbers<[1], [0], [0], [1], [0, 0, 1, 1], [], []>} : vector<16x256xbf16>, vector<256x256xbf16>, vector<16x256xf32> -> vector<16x256xf32>
    %c0_73 = arith.constant 0 : index
    %c0_74 = arith.constant 0 : index
    %106 = vector.load %arg9[%c0_73, %c0_74] : memref<1x256xf32, #tpu.memory_space<vmem>>, vector<1x256xf32>
    %107 = vector.broadcast %106 : vector<1x256xf32> to vector<16x256xf32>
    %108 = arith.addf %105, %107 : vector<16x256xf32>
    %109 = math.tanh %108 : vector<16x256xf32>
    %110 = arith.truncf %109 : vector<16x256xf32> to vector<16x256xbf16>
    %c0_75 = arith.constant 0 : index
    %c0_76 = arith.constant 0 : index
    %111 = vector.load %arg15[%c0_75, %c0_76] : memref<256x128xbf16, #tpu.memory_space<vmem>>, vector<256x128xbf16>
    %cst_77 = arith.constant dense<0.000000e+00> : vector<16x128xf32>
    %112 = tpu.matmul %110, %111, %cst_77 {dimension_numbers = #tpu.dot_dimension_numbers<[1], [0], [0], [1], [0, 0, 1, 1], [], []>} : vector<16x256xbf16>, vector<256x128xbf16>, vector<16x128xf32> -> vector<16x128xf32>
    %c0_78 = arith.constant 0 : index
    %c0_79 = arith.constant 0 : index
    %113 = vector.load %arg10[%c0_78, %c0_79] : memref<1x128xf32, #tpu.memory_space<vmem>>, vector<1x128xf32>
    %114 = vector.broadcast %113 : vector<1x128xf32> to vector<16x128xf32>
    %115 = arith.addf %112, %114 : vector<16x128xf32>
    %c0_80 = arith.constant 0 : index
    %c0_81 = arith.constant 0 : index
    %116 = vector.load %arg12[%c0_80, %c0_81] : memref<16x128xf32, #tpu.memory_space<vmem>>, vector<16x128xf32>
    %117 = arith.index_cast %84 : i32 to index
    %118 = memref.load %arg2[%117] : memref<8xf32, #tpu.memory_space<smem>>
    %119 = vector.broadcast %118 : f32 to vector<16x128xf32>
    %120 = arith.mulf %119, %115 : vector<16x128xf32>
    %121 = arith.addf %116, %120 : vector<16x128xf32>
    %c0_82 = arith.constant 0 : index
    %c0_83 = arith.constant 0 : index
    %122 = vector.load %arg12[%c0_82, %c0_83] : memref<16x128xf32, #tpu.memory_space<vmem>>, vector<16x128xf32>
    tpu.vector_store %arg12[%c0_82, %c0_83], %121 {strides = array<i32>} : memref<16x128xf32, #tpu.memory_space<vmem>>, vector<16x128xf32>,
    %c4_i32_84 = arith.constant 4 : i32
    %123 = arith.muli %arg0, %c4_i32_84 : i32
    %c3_i32 = arith.constant 3 : i32
    %124 = arith.addi %123, %c3_i32 : i32
    %c0_85 = arith.constant 0 : index
    %c0_86 = arith.constant 0 : index
    %125 = vector.load %arg12[%c0_85, %c0_86] : memref<16x128xf32, #tpu.memory_space<vmem>>, vector<16x128xf32>
    %c3 = arith.constant 3 : index
    %c0_87 = arith.constant 0 : index
    %c0_88 = arith.constant 0 : index
    %126 = vector.load %arg11[%c3, %c0_87, %c0_88] : memref<4x16x128xf32, #tpu.memory_space<vmem>>, vector<1x16x128xf32>
    %127 = vector.shape_cast %126 : vector<1x16x128xf32> to vector<16x128xf32>
    %128 = vector.shape_cast %125 : vector<16x128xf32> to vector<1x16x128xf32>
    tpu.vector_store %arg11[%c3, %c0_87, %c0_88], %128 {strides = array<i32>} : memref<4x16x128xf32, #tpu.memory_space<vmem>>, vector<1x16x128xf32>,
    %c0_89 = arith.constant 0 : index
    %c0_90 = arith.constant 0 : index
    %129 = vector.load %arg12[%c0_89, %c0_90] : memref<16x128xf32, #tpu.memory_space<vmem>>, vector<16x128xf32>
    %130 = arith.truncf %129 : vector<16x128xf32> to vector<16x128xbf16>
    %131 = arith.index_cast %124 : i32 to index
    %132 = memref.load %arg1[%131] : memref<8xf32, #tpu.memory_space<smem>>
    %c0_91 = arith.constant 0 : index
    %c0_92 = arith.constant 0 : index
    %133 = vector.load %arg7[%c0_91, %c0_92] : memref<1x256xf32, #tpu.memory_space<vmem>>, vector<1x256xf32>
    %134 = vector.broadcast %132 : f32 to vector<1x256xf32>
    %135 = arith.mulf %134, %133 : vector<1x256xf32>
    %c0_93 = arith.constant 0 : index
    %c0_94 = arith.constant 0 : index
    %136 = vector.load %arg8[%c0_93, %c0_94] : memref<1x256xf32, #tpu.memory_space<vmem>>, vector<1x256xf32>
    %137 = arith.addf %135, %136 : vector<1x256xf32>
    %c0_95 = arith.constant 0 : index
    %c0_96 = arith.constant 0 : index
    %138 = vector.load %arg13[%c0_95, %c0_96] : memref<128x256xbf16, #tpu.memory_space<vmem>>, vector<128x256xbf16>
    %cst_97 = arith.constant dense<0.000000e+00> : vector<16x256xf32>
    %139 = tpu.matmul %130, %138, %cst_97 {dimension_numbers = #tpu.dot_dimension_numbers<[1], [0], [0], [1], [0, 0, 1, 1], [], []>} : vector<16x128xbf16>, vector<128x256xbf16>, vector<16x256xf32> -> vector<16x256xf32>
    %140 = vector.broadcast %137 : vector<1x256xf32> to vector<16x256xf32>
    %141 = arith.addf %139, %140 : vector<16x256xf32>
    %142 = math.tanh %141 : vector<16x256xf32>
    %143 = arith.truncf %142 : vector<16x256xf32> to vector<16x256xbf16>
    %c0_98 = arith.constant 0 : index
    %c0_99 = arith.constant 0 : index
    %144 = vector.load %arg14[%c0_98, %c0_99] : memref<256x256xbf16, #tpu.memory_space<vmem>>, vector<256x256xbf16>
    %cst_100 = arith.constant dense<0.000000e+00> : vector<16x256xf32>
    %145 = tpu.matmul %143, %144, %cst_100 {dimension_numbers = #tpu.dot_dimension_numbers<[1], [0], [0], [1], [0, 0, 1, 1], [], []>} : vector<16x256xbf16>, vector<256x256xbf16>, vector<16x256xf32> -> vector<16x256xf32>
    %c0_101 = arith.constant 0 : index
    %c0_102 = arith.constant 0 : index
    %146 = vector.load %arg9[%c0_101, %c0_102] : memref<1x256xf32, #tpu.memory_space<vmem>>, vector<1x256xf32>
    %147 = vector.broadcast %146 : vector<1x256xf32> to vector<16x256xf32>
    %148 = arith.addf %145, %147 : vector<16x256xf32>
    %149 = math.tanh %148 : vector<16x256xf32>
    %150 = arith.truncf %149 : vector<16x256xf32> to vector<16x256xbf16>
    %c0_103 = arith.constant 0 : index
    %c0_104 = arith.constant 0 : index
    %151 = vector.load %arg15[%c0_103, %c0_104] : memref<256x128xbf16, #tpu.memory_space<vmem>>, vector<256x128xbf16>
    %cst_105 = arith.constant dense<0.000000e+00> : vector<16x128xf32>
    %152 = tpu.matmul %150, %151, %cst_105 {dimension_numbers = #tpu.dot_dimension_numbers<[1], [0], [0], [1], [0, 0, 1, 1], [], []>} : vector<16x256xbf16>, vector<256x128xbf16>, vector<16x128xf32> -> vector<16x128xf32>
    %c0_106 = arith.constant 0 : index
    %c0_107 = arith.constant 0 : index
    %153 = vector.load %arg10[%c0_106, %c0_107] : memref<1x128xf32, #tpu.memory_space<vmem>>, vector<1x128xf32>
    %154 = vector.broadcast %153 : vector<1x128xf32> to vector<16x128xf32>
    %155 = arith.addf %152, %154 : vector<16x128xf32>
    %c0_108 = arith.constant 0 : index
    %c0_109 = arith.constant 0 : index
    %156 = vector.load %arg12[%c0_108, %c0_109] : memref<16x128xf32, #tpu.memory_space<vmem>>, vector<16x128xf32>
    %157 = arith.index_cast %124 : i32 to index
    %158 = memref.load %arg2[%157] : memref<8xf32, #tpu.memory_space<smem>>
    %159 = vector.broadcast %158 : f32 to vector<16x128xf32>
    %160 = arith.mulf %159, %155 : vector<16x128xf32>
    %161 = arith.addf %156, %160 : vector<16x128xf32>
    %c0_110 = arith.constant 0 : index
    %c0_111 = arith.constant 0 : index
    %162 = vector.load %arg12[%c0_110, %c0_111] : memref<16x128xf32, #tpu.memory_space<vmem>>, vector<16x128xf32>
    tpu.vector_store %arg12[%c0_110, %c0_111], %161 {strides = array<i32>} : memref<16x128xf32, #tpu.memory_space<vmem>>, vector<16x128xf32>,
    return
  }
  func.func @transform_0(%arg0: i32) -> i32 {
    %c0_i32 = arith.constant 0 : i32
    %c0_i32_0 = arith.constant 0 : i32
    return %c0_i32 : i32
  }
  func.func @transform_1(%arg0: i32) -> i32 {
    %c0_i32 = arith.constant 0 : i32
    %c0_i32_0 = arith.constant 0 : i32
    return %c0_i32 : i32
  }
  func.func @transform_6(%arg0: i32) -> (i32, i32) {
    %c0_i32 = arith.constant 0 : i32
    %c0_i32_0 = arith.constant 0 : i32
    %c0_i32_1 = arith.constant 0 : i32
    return %c0_i32, %c0_i32_0 : i32, i32
  }
  func.func @transform_7(%arg0: i32) -> (i32, i32) {
    %c0_i32 = arith.constant 0 : i32
    %c0_i32_0 = arith.constant 0 : i32
    %c0_i32_1 = arith.constant 0 : i32
    return %c0_i32, %c0_i32_0 : i32, i32
  }
  func.func @transform_8(%arg0: i32) -> (i32, i32) {
    %c0_i32 = arith.constant 0 : i32
    %c0_i32_0 = arith.constant 0 : i32
    %c0_i32_1 = arith.constant 0 : i32
    return %c0_i32, %c0_i32_0 : i32, i32
  }
  func.func @transform_9(%arg0: i32) -> (i32, i32) {
    %c0_i32 = arith.constant 0 : i32
    %c0_i32_0 = arith.constant 0 : i32
    %c0_i32_1 = arith.constant 0 : i32
    return %c0_i32, %c0_i32_0 : i32, i32
  }
  func.func @transform_10(%arg0: i32) -> (i32, i32, i32) {
    %c0_i32 = arith.constant 0 : i32
    %c0_i32_0 = arith.constant 0 : i32
    %c0_i32_1 = arith.constant 0 : i32
    return %arg0, %c0_i32, %c0_i32_0 : i32, i32, i32
  }
}

</mosaic_0001>

<llo_original>
// kernel: augmented_neural_ode_forward.1
$region0: #{augmented_neural_ode_forward.1}
  #allocation0 [shape = 'u32[]', space=smem, size = 0x4, offset = 0x4, fixed_abs, tag = 'smem constant byte address 0x4 - core index']
  #allocation1 [shape = 'u32[72,128]{1,0:T(1,128)}', space=vmem, size = 0x9000, scoped, tag = 'internal scratch']
  #allocation2 [shape = 'f32[16,128]{1,0:T(8,128)}', space=vmem, size = 0x2000, scoped, tag = 'scratch operand']
  #allocation3 [shape = 'bf16[128,256]{1,0:T(8,128)(2,1)}', space=vmem, size = 0x10000, scoped, tag = 'scratch operand']
  #allocation4 [shape = 'bf16[256,256]{1,0:T(8,128)(2,1)}', space=vmem, size = 0x20000, scoped, tag = 'scratch operand']
  #allocation5 [shape = 'bf16[256,128]{1,0:T(8,128)(2,1)}', space=vmem, size = 0x10000, scoped, tag = 'scratch operand']
  #allocation11 [shape = 's32[]', space=sflag, size = 0x4, offset = 0, fixed_abs, tag = 'sflag constant byte address 0x0 - dummy sync flag']
  #allocation13 [shape = 's32[]', space=sflag, size = 0x4, offset = 0, fixed_abs, tag = 'sflag constant byte address 0x0 - dummy sync flag']
  #allocation14 [shape = 's32[]', space=sflag, size = 0x4, offset = 0, fixed_abs, tag = 'sflag constant byte address 0x0 - dummy sync flag']
  #allocation15 [shape = 'u32[]', space=smem, size = 0x4, offset = 0x44, fixed_abs, tag = 'smem constant byte address 0x44 - assertion arg 0']
  #allocation16 [shape = 'u32[]', space=smem, size = 0x4, offset = 0x48, fixed_abs, tag = 'smem constant byte address 0x48 - assertion arg 1']
  #allocation18 [shape = 's32[]', space=sflag, size = 0x4, offset = 0, fixed_abs, tag = 'sflag constant byte address 0x0 - dummy sync flag']
  #allocation19 [shape = 's32[]', space=sflag, size = 0x4, offset = 0, fixed_abs, tag = 'sflag constant byte address 0x0 - dummy sync flag']
  #allocation21 [shape = 's32[]', space=sflag, size = 0x4, offset = 0, fixed_abs, tag = 'sflag constant byte address 0x0 - dummy sync flag']
  #allocation22 [shape = 's32[]', space=sflag, size = 0x4, offset = 0, fixed_abs, tag = 'sflag constant byte address 0x0 - dummy sync flag']
  %s0 = inlined_call_operand.vmem [shape: f32[8], index: 0, kind: input, shape index: {}]
  %s1 = inlined_call_operand.vmem [shape: f32[8], index: 1, kind: input, shape index: {}]
  %s2 = inlined_call_operand.vmem [shape: f32[16,128], index: 2, kind: input, shape index: {}]
  %s3 = inlined_call_operand.hbm [shape: bf16[128,256], index: 3, kind: input, shape index: {}]
  %s4 = inlined_call_operand.hbm [shape: bf16[256,256], index: 4, kind: input, shape index: {}]
  %s5 = inlined_call_operand.hbm [shape: bf16[256,128], index: 5, kind: input, shape index: {}]
  %s6 = inlined_call_operand.vmem [shape: f32[1,256], index: 6, kind: input, shape index: {}]
  %s7 = inlined_call_operand.vmem [shape: f32[1,256], index: 7, kind: input, shape index: {}]
  %s8 = inlined_call_operand.vmem [shape: f32[1,256], index: 8, kind: input, shape index: {}]
  %s9 = inlined_call_operand.vmem [shape: f32[1,128], index: 9, kind: input, shape index: {}]
  %s10 = inlined_call_operand.vmem [shape: f32[8,16,128], index: 10, kind: output, shape index: {}]
  %s11 = sld [smem:[#allocation0]]
  $region104: #{augmented_neural_ode_forward.1} parent=0
    _
  %s13 = ssub.s32 1, %s11
  %s14 = scalar_select 0, %s13, %s11
  $region1: #{augmented_neural_ode_forward.1} parent=0
    #allocation6 [shape = 'u8[512]{0}', space=smem, size = 0x200, scoped, tag = 'input window, operand 0, single buffered']
    #allocation7 [shape = 's32[2]{0}', space=sflag, size = 0x8, scoped, tag = 'scoped memory for augmented_neural_ode_forward.1']
    #allocation8 [shape = 'u8[512]{0}', space=smem, size = 0x200, scoped, tag = 'input window, operand 1, single buffered']
    #allocation9 [shape = 's32[1]{0}', space=sflag, size = 0x4, scoped, tag = 'scoped memory for augmented_neural_ode_forward.1']
    %15 = vsyncpa [#allocation7], 0
    %16 = vsyncpa [#allocation9], 0
    loop: start=0, step=1, limit=4
    $region2: #{augmented_neural_ode_forward.1} parent=1 // loop_pre_header
      _
    $region3: #{augmented_neural_ode_forward.1} parent=1 // loop_header
      %s18 = sphi 0, %s22
      %p19 = scmp.ge.s32.totalorder %s18, 4
      %s26 = sphi 0, %s26
      %s28 = sphi 0, %s26
      %s29 = sphi 0, %s28
      %s43 = sphi 0, %s29
      %s47 = sphi 0, %s47
      %s49 = sphi 0, %s47
      %s50 = sphi 0, %s49
      %s64 = sphi 0, %s50
      %s68 = sphi 0, %s68
      %s70 = sphi 0, %s68
      %s71 = sphi 0, %s70
      %s85 = sphi 0, %s71
      %s89 = sphi 0, %s89
      %s91 = sphi 0, %s89
      %s92 = sphi 0, %s91
      %s106 = sphi 0, %s92
      %s110 = sphi 0, %s110
      %s112 = sphi 0, %s110
      %s113 = sphi 0, %s112
      %s127 = sphi 0, %s113
      %s131 = sphi 0, %s131
      %s133 = sphi 0, %s131
      %s134 = sphi 0, %s133
      %s148 = sphi 0, %s134
      %s154 = sphi 0, %s156
      %s157 = sphi 0, %s154
      %s158 = sphi 0, %s157
      %s174 = sphi 0, %s158
    $region4: #{augmented_neural_ode_forward.1} parent=1 // loop_header_branch
      %21 = sbr.rel (%p19) target = $region8
    $region5: #{augmented_neural_ode_forward.1} parent=1 // loop_body
      %s23 = ssub.s32 %s18, 1
      %s24 = ssub.s32 %s18, 2
      %s25 = sadd.s32 %s18, 1
      %s27 = sadd.s32 %s26, 1
      %p30 = scmp.eq.s32.totalorder %s18, 1
      %p31 = scmp.ne.s32.totalorder %s26, %s28
      %p32 = scmp.eq.s32.totalorder %s18, 0
      %p33 = por %p31, %p32
      %p34 = scmp.ne.s32.totalorder %s26, %s28
      %p35 = scmp.eq.s32.totalorder %s23, 1
      %p36 = por %p34, %p35
      %p37 = scmp.ne.s32.totalorder %s28, %s29
      %p38 = scmp.eq.s32.totalorder %s23, 0
      %p39 = por %p37, %p38
      %p40 = scmp.ne.s32.totalorder %s28, %s29
      %p41 = scmp.eq.s32.totalorder %s24, 1
      %p42 = por %p40, %p41
      %p44 = scmp.ne.s32.totalorder %s29, %s43
      %p45 = scmp.eq.s32.totalorder %s24, 0
      %p46 = por %p44, %p45
      %s48 = sadd.s32 %s47, 1
      %p51 = scmp.eq.s32.totalorder %s18, 1
      %p52 = scmp.ne.s32.totalorder %s47, %s49
      %p53 = scmp.eq.s32.totalorder %s18, 0
      %p54 = por %p52, %p53
      %p55 = scmp.ne.s32.totalorder %s47, %s49
      %p56 = scmp.eq.s32.totalorder %s23, 1
      %p57 = por %p55, %p56
      %p58 = scmp.ne.s32.totalorder %s49, %s50
      %p59 = scmp.eq.s32.totalorder %s23, 0
      %p60 = por %p58, %p59
      %p61 = scmp.ne.s32.totalorder %s49, %s50
      %p62 = scmp.eq.s32.totalorder %s24, 1
      %p63 = por %p61, %p62
      %p65 = scmp.ne.s32.totalorder %s50, %s64
      %p66 = scmp.eq.s32.totalorder %s24, 0
      %p67 = por %p65, %p66
      %s69 = sadd.s32 %s68, 1
      %p72 = scmp.eq.s32.totalorder %s18, 1
      %p73 = scmp.ne.s32.totalorder %s68, %s70
      %p74 = scmp.eq.s32.totalorder %s18, 0
      %p75 = por %p73, %p74
      %p76 = scmp.ne.s32.totalorder %s68, %s70
      %p77 = scmp.eq.s32.totalorder %s23, 1
      %p78 = por %p76, %p77
      %p79 = scmp.ne.s32.totalorder %s70, %s71
      %p80 = scmp.eq.s32.totalorder %s23, 0
      %p81 = por %p79, %p80
      %p82 = scmp.ne.s32.totalorder %s70, %s71
      %p83 = scmp.eq.s32.totalorder %s24, 1
      %p84 = por %p82, %p83
      %p86 = scmp.ne.s32.totalorder %s71, %s85
      %p87 = scmp.eq.s32.totalorder %s24, 0
      %p88 = por %p86, %p87
      %s90 = sadd.s32 %s89, 1
      %p93 = scmp.eq.s32.totalorder %s18, 1
      %p94 = scmp.ne.s32.totalorder %s89, %s91
      %p95 = scmp.eq.s32.totalorder %s18, 0
      %p96 = por %p94, %p95
      %p97 = scmp.ne.s32.totalorder %s89, %s91
      %p98 = scmp.eq.s32.totalorder %s23, 1
      %p99 = por %p97, %p98
      %p100 = scmp.ne.s32.totalorder %s91, %s92
      %p101 = scmp.eq.s32.totalorder %s23, 0
      %p102 = por %p100, %p101
      %p103 = scmp.ne.s32.totalorder %s91, %s92
      %p104 = scmp.eq.s32.totalorder %s24, 1
      %p105 = por %p103, %p104
      %p107 = scmp.ne.s32.totalorder %s92, %s106
      %p108 = scmp.eq.s32.totalorder %s24, 0
      %p109 = por %p107, %p108
      %s111 = sadd.s32 %s110, 1
      %p114 = scmp.eq.s32.totalorder %s18, 1
      %p115 = scmp.ne.s32.totalorder %s110, %s112
      %p116 = scmp.eq.s32.totalorder %s18, 0
      %p117 = por %p115, %p116
      %p118 = scmp.ne.s32.totalorder %s110, %s112
      %p119 = scmp.eq.s32.totalorder %s23, 1
      %p120 = por %p118, %p119
      %p121 = scmp.ne.s32.totalorder %s112, %s113
      %p122 = scmp.eq.s32.totalorder %s23, 0
      %p123 = por %p121, %p122
      %p124 = scmp.ne.s32.totalorder %s112, %s113
      %p125 = scmp.eq.s32.totalorder %s24, 1
      %p126 = por %p124, %p125
      %p128 = scmp.ne.s32.totalorder %s113, %s127
      %p129 = scmp.eq.s32.totalorder %s24, 0
      %p130 = por %p128, %p129
      %s132 = sadd.s32 %s131, 1
      %p135 = scmp.eq.s32.totalorder %s18, 1
      %p136 = scmp.ne.s32.totalorder %s131, %s133
      %p137 = scmp.eq.s32.totalorder %s18, 0
      %p138 = por %p136, %p137
      %p139 = scmp.ne.s32.totalorder %s131, %s133
      %p140 = scmp.eq.s32.totalorder %s23, 1
      %p141 = por %p139, %p140
      %p142 = scmp.ne.s32.totalorder %s133, %s134
      %p143 = scmp.eq.s32.totalorder %s23, 0
      %p144 = por %p142, %p143
      %p145 = scmp.ne.s32.totalorder %s133, %s134
      %p146 = scmp.eq.s32.totalorder %s24, 1
      %p147 = por %p145, %p146
      %p149 = scmp.ne.s32.totalorder %s134, %s148
      %p150 = scmp.eq.s32.totalorder %s24, 0
      %p151 = por %p149, %p150
      %s152 = ssub.s32 %s18, %s25
      %p153 = scmp.eq.s32.totalorder %s152, 0
      %s155 = sadd.s32 %s154, 1
      %s156 = scalar_select %p153, %s154, %s155
      %p159 = pneg %p153
      %p160 = scmp.eq.s32.totalorder %s18, 1
      %p161 = por %p159, %p160
      %p162 = scmp.ne.s32.totalorder %s154, %s157
      %p163 = scmp.eq.s32.totalorder %s18, 0
      %p164 = por %p162, %p163
      %p165 = scmp.ne.s32.totalorder %s154, %s157
      %p166 = scmp.eq.s32.totalorder %s23, 1
      %p167 = por %p165, %p166
      %p168 = scmp.ne.s32.totalorder %s157, %s158
      %p169 = scmp.eq.s32.totalorder %s23, 0
      %p170 = por %p168, %p169
      %p171 = scmp.ne.s32.totalorder %s157, %s158
      %p172 = scmp.eq.s32.totalorder %s24, 1
      %p173 = por %p171, %p172
      %p175 = scmp.ne.s32.totalorder %s158, %s174
      %p176 = scmp.eq.s32.totalorder %s24, 0
      %p177 = por %p175, %p176
      %p178 = scmp.le.s32.totalorder 1, %s18
      %p179 = scmp.lt.s32.totalorder %s18, 3
      %p180 = pnand %p178, %p179
      %p181 = pneg %p180
      // Predicated region
      $region9: #{augmented_neural_ode_forward.1} parent=5 // pred_check
        _
      $region10: #{augmented_neural_ode_forward.1} parent=5 // pred_check_branch
        %183 = sbr.rel (%p180) target = $region12
      $region11: #{augmented_neural_ode_forward.1} parent=5 // pred_region
        %s184 = ssub.s32 %s18, 1
        // Predicated region
        $region13: #{augmented_neural_ode_forward.1} parent=11 // pred_check
          %p185 = pneg %p39
        $region14: #{augmented_neural_ode_forward.1} parent=11 // pred_check_branch
          %187 = sbr.rel (%p185) target = $region16
        $region15: #{augmented_neural_ode_forward.1} parent=11 // pred_region
          %189 = vsyncadd [#allocation7], 0
          %s191 = sshll.u32 %s0, 4
          %s192 = int_to_ptr.vmem [resolvable:$true] %s191
          %194 = dma.vmem_to_smem %s192, 16, [#allocation6], [#allocation7]
        $region16: #{augmented_neural_ode_forward.1} parent=11 // pred_fallthru
          _
        // Predicated region
        $region17: #{augmented_neural_ode_forward.1} parent=11 // pred_check
          %p195 = pneg %p60
        $region18: #{augmented_neural_ode_forward.1} parent=11 // pred_check_branch
          %197 = sbr.rel (%p195) target = $region20
        $region19: #{augmented_neural_ode_forward.1} parent=11 // pred_region
          %199 = vsyncadd [#allocation9], 0
          %s201 = sshll.u32 %s1, 4
          %s202 = int_to_ptr.vmem [resolvable:$true] %s201
          %204 = dma.vmem_to_smem %s202, 16, [#allocation8], [#allocation9]
        $region20: #{augmented_neural_ode_forward.1} parent=11 // pred_fallthru
          _
        // Predicated region
        $region21: #{augmented_neural_ode_forward.1} parent=11 // pred_check
          %p205 = pneg %p81
        $region22: #{augmented_neural_ode_forward.1} parent=11 // pred_check_branch
          %207 = sbr.rel (%p205) target = $region24
        $region23: #{augmented_neural_ode_forward.1} parent=11 // pred_region
          _
        $region24: #{augmented_neural_ode_forward.1} parent=11 // pred_fallthru
          _
        // Predicated region
        $region25: #{augmented_neural_ode_forward.1} parent=11 // pred_check
          %p208 = pneg %p102
        $region26: #{augmented_neural_ode_forward.1} parent=11 // pred_check_branch
          %210 = sbr.rel (%p208) target = $region28
        $region27: #{augmented_neural_ode_forward.1} parent=11 // pred_region
          _
        $region28: #{augmented_neural_ode_forward.1} parent=11 // pred_fallthru
          _
        // Predicated region
        $region29: #{augmented_neural_ode_forward.1} parent=11 // pred_check
          %p211 = pneg %p123
        $region30: #{augmented_neural_ode_forward.1} parent=11 // pred_check_branch
          %213 = sbr.rel (%p211) target = $region32
        $region31: #{augmented_neural_ode_forward.1} parent=11 // pred_region
          _
        $region32: #{augmented_neural_ode_forward.1} parent=11 // pred_fallthru
          _
        // Predicated region
        $region33: #{augmented_neural_ode_forward.1} parent=11 // pred_check
          %p214 = pneg %p144
        $region34: #{augmented_neural_ode_forward.1} parent=11 // pred_check_branch
          %216 = sbr.rel (%p214) target = $region36
        $region35: #{augmented_neural_ode_forward.1} parent=11 // pred_region
          _
        $region36: #{augmented_neural_ode_forward.1} parent=11 // pred_fallthru
          _
      $region12: #{augmented_neural_ode_forward.1} parent=5 // pred_fallthru
        _
      %p217 = scmp.lt.s32.totalorder %s18, 2
      // Predicated region
      $region37: #{augmented_neural_ode_forward.1} parent=5 // pred_check
        %p218 = pneg %p217
      $region38: #{augmented_neural_ode_forward.1} parent=5 // pred_check_branch
        %220 = sbr.rel (%p218) target = $region40
      $region39: #{augmented_neural_ode_forward.1} parent=5 // pred_region
        _
      $region40: #{augmented_neural_ode_forward.1} parent=5 // pred_fallthru
        _
      %p221 = scmp.le.s32.totalorder 1, %s18
      %p222 = scmp.lt.s32.totalorder %s18, 3
      %p223 = pnand %p221, %p222
      %p224 = pneg %p223
      // Predicated region
      $region41: #{augmented_neural_ode_forward.1} parent=5 // pred_check
        _
      $region42: #{augmented_neural_ode_forward.1} parent=5 // pred_check_branch
        %226 = sbr.rel (%p223) target = $region44
      $region43: #{augmented_neural_ode_forward.1} parent=5 // pred_region
        %s227 = ssub.s32 %s18, 1
        // Predicated region
        $region45: #{augmented_neural_ode_forward.1} parent=43 // pred_check
          %p228 = pneg %p39
        $region46: #{augmented_neural_ode_forward.1} parent=43 // pred_check_branch
          %230 = sbr.rel (%p228) target = $region48
        $region47: #{augmented_neural_ode_forward.1} parent=43 // pred_region
          %232 = dma.done [#allocation7], 16
        $region48: #{augmented_neural_ode_forward.1} parent=43 // pred_fallthru
          _
        // Predicated region
        $region49: #{augmented_neural_ode_forward.1} parent=43 // pred_check
          %p233 = pneg %p60
        $region50: #{augmented_neural_ode_forward.1} parent=43 // pred_check_branch
          %235 = sbr.rel (%p233) target = $region52
        $region51: #{augmented_neural_ode_forward.1} parent=43 // pred_region
          %237 = dma.done [#allocation9], 16
        $region52: #{augmented_neural_ode_forward.1} parent=43 // pred_fallthru
          _
        %238 = sfence
        %p239 = pneg %p39
        %p240 = pneg %p36
        %p241 = pneg %p60
        %p242 = pneg %p57
        %p243 = pneg %p81
        %p244 = pneg %p78
        %p245 = pneg %p102
        %p246 = pneg %p99
        %p247 = pneg %p123
        %p248 = pneg %p120
        %p249 = pneg %p144
        %p250 = pneg %p141
        %p251 = pneg %p170
        %p252 = pneg %p167
        %s253 = smul.u32 4, %s23
        %p254 = scmp.lt.s32.totalorder %s253, 7
        %s255 = scalar_select %p254, %s253, 7
        %s256 = smul.addr %s255, 2
        %s257 = smul.addr %s256, 8
        %s258 = scalar_lea.vmem %s10, %s257
        %s259 = smul.u32 4, %s23
        %p260 = scmp.lt.s32.totalorder %s259, 7
        %s261 = scalar_select %p260, %s259, 7
        %s262 = smul.addr %s261, 2
        %s263 = smul.addr %s262, 8
        %s264 = scalar_lea.vmem %s10, %s263
        %s265 = smul.u32 4, %s23
        %p266 = scmp.eq.s32.totalorder %s23, 0
        // Predicated region
        $region53: #{augmented_neural_ode_forward.1} parent=43 // pred_check
          %p267 = pneg %p266
        $region54: #{augmented_neural_ode_forward.1} parent=43 // pred_check_branch
          %269 = sbr.rel (%p267) target = $region56
        $region55: #{augmented_neural_ode_forward.1} parent=43 // pred_region
          $region57: #{augmented_neural_ode_forward.1} parent=55
            #allocation10 [shape = 's32[1]{0}', space=sflag, size = 0x4, scoped, tag = 'scoped memory for augmented_neural_ode_forward.1']
            // Predicated region
            $region58: #{augmented_neural_ode_forward.1} parent=57 // pred_check
              _
            $region59: #{augmented_neural_ode_forward.1} parent=57 // pred_check_branch
              %271 = sbr.rel (0) target = $region61
            $region60: #{augmented_neural_ode_forward.1} parent=57 // pred_region
              loop: start=0, step=1, limit=1
              $region62: #{augmented_neural_ode_forward.1} parent=60 // loop_pre_header
                _
              $region63: #{augmented_neural_ode_forward.1} parent=60 // loop_header
                %s273 = sphi 0, %s277
                %p274 = scmp.ge.s32.totalorder %s273, 1
                %s278 = sphi %s2, %s2
                %s279 = sphi [#allocation2], [#allocation2]
              $region64: #{augmented_neural_ode_forward.1} parent=60 // loop_header_branch
                %276 = sbr.rel (%p274) target = $region68
              $region65: #{augmented_neural_ode_forward.1} parent=60 // loop_body
                %v280 = vld [vmem:[%s278] sm:$0xff]
                %281 = vst [vmem:[%s279] sm:$0xff] %v280
                %v282 = vld [vmem:[%s278 + $0x8] sm:$0xff]
                %283 = vst [vmem:[%s279 + $0x8] sm:$0xff] %v282
              $region66: #{augmented_neural_ode_forward.1} parent=60 // loop_footer
                %s277 = sadd.s32 1, %s273
              $region67: #{augmented_neural_ode_forward.1} parent=60 // loop_footer_branch
                %272 = sbr.rel target = $region63
              $region68: #{augmented_neural_ode_forward.1} parent=60 // loop_exit
                _
            $region61: #{augmented_neural_ode_forward.1} parent=57 // pred_fallthru
              _
            // Predicated region
            $region69: #{augmented_neural_ode_forward.1} parent=57 // pred_check
              _
            $region70: #{augmented_neural_ode_forward.1} parent=57 // pred_check_branch
              %285 = sbr.rel target = $region72
            $region71: #{augmented_neural_ode_forward.1} parent=57 // pred_region
              _
            $region72: #{augmented_neural_ode_forward.1} parent=57 // pred_fallthru
              _
            // Predicated region
            $region73: #{augmented_neural_ode_forward.1} parent=57 // pred_check
              _
            $region74: #{augmented_neural_ode_forward.1} parent=57 // pred_check_branch
              %288 = sbr.rel (0) target = $region76
            $region75: #{augmented_neural_ode_forward.1} parent=57 // pred_region
              %289 = vsyncadd [#allocation10], 256
            $region76: #{augmented_neural_ode_forward.1} parent=57 // pred_fallthru
              _
            %s290 = smul.u32 16, 1
            %s291 = sshll.u32 %s290, 4
            %292 = dma.done [#allocation10], %s291
          $region77: #{augmented_neural_ode_forward.1} parent=55
            #allocation12 [shape = 's32[1]{0}', space=sflag, size = 0x4, scoped, tag = 'scoped memory for augmented_neural_ode_forward.1']
            // Predicated region
            $region78: #{augmented_neural_ode_forward.1} parent=77 // pred_check
              _
            $region79: #{augmented_neural_ode_forward.1} parent=77 // pred_check_branch
              %294 = sbr.rel target = $region81
            $region80: #{augmented_neural_ode_forward.1} parent=77 // pred_region
              %295 = sst [smem:[#allocation15]] [#allocation14]
              %296 = sst [smem:[#allocation16]] [#allocation13]
            $region81: #{augmented_neural_ode_forward.1} parent=77 // pred_fallthru
              _
            %298 = shalt.err (0)
            %s300 = sshll.u32 %s3, 4
            %s301 = int_to_ptr.hbm [resolvable:$true] %s300
            %s302 = sshll.u32 [#allocation3], 4
            %s303 = int_to_ptr.vmem [resolvable:$true] %s302
            %305 = dma.hbm_to_vmem [thread:$0]  %s301, 2048, %s303, [#allocation12]
            %s306 = smul.u32 4, 16
            %s307 = smul.u32 %s306, 2
            %s308 = sshll.u32 %s307, 4
            %309 = dma.done [#allocation12], %s308
          $region82: #{augmented_neural_ode_forward.1} parent=55
            #allocation17 [shape = 's32[1]{0}', space=sflag, size = 0x4, scoped, tag = 'scoped memory for augmented_neural_ode_forward.1']
            // Predicated region
            $region83: #{augmented_neural_ode_forward.1} parent=82 // pred_check
              _
            $region84: #{augmented_neural_ode_forward.1} parent=82 // pred_check_branch
              %311 = sbr.rel target = $region86
            $region85: #{augmented_neural_ode_forward.1} parent=82 // pred_region
              %312 = sst [smem:[#allocation15]] [#allocation19]
              %313 = sst [smem:[#allocation16]] [#allocation18]
            $region86: #{augmented_neural_ode_forward.1} parent=82 // pred_fallthru
              _
            %315 = shalt.err (0)
            %s317 = sshll.u32 %s4, 4
            %s318 = int_to_ptr.hbm [resolvable:$true] %s317
            %s319 = sshll.u32 [#allocation4], 4
            %s320 = int_to_ptr.vmem [resolvable:$true] %s319
            %322 = dma.hbm_to_vmem [thread:$0]  %s318, 4096, %s320, [#allocation17]
            %s323 = smul.u32 4, 32
            %s324 = smul.u32 %s323, 2
            %s325 = sshll.u32 %s324, 4
            %326 = dma.done [#allocation17], %s325
          $region87: #{augmented_neural_ode_forward.1} parent=55
            #allocation20 [shape = 's32[1]{0}', space=sflag, size = 0x4, scoped, tag = 'scoped memory for augmented_neural_ode_forward.1']
            // Predicated region
            $region88: #{augmented_neural_ode_forward.1} parent=87 // pred_check
              _
            $region89: #{augmented_neural_ode_forward.1} parent=87 // pred_check_branch
              %328 = sbr.rel target = $region91
            $region90: #{augmented_neural_ode_forward.1} parent=87 // pred_region
              %329 = sst [smem:[#allocation15]] [#allocation22]
              %330 = sst [smem:[#allocation16]] [#allocation21]
            $region91: #{augmented_neural_ode_forward.1} parent=87 // pred_fallthru
              _
            %332 = shalt.err (0)
            %s334 = sshll.u32 %s5, 4
            %s335 = int_to_ptr.hbm [resolvable:$true] %s334
            %s336 = sshll.u32 [#allocation5], 4
            %s337 = int_to_ptr.vmem [resolvable:$true] %s336
            %339 = dma.hbm_to_vmem [thread:$0]  %s335, 2048, %s337, [#allocation20]
            %s340 = smul.u32 4, 32
            %s341 = smul.u32 %s340, 1
            %s342 = sshll.u32 %s341, 4
            %343 = dma.done [#allocation20], %s342
        $region56: #{augmented_neural_ode_forward.1} parent=43 // pred_fallthru
          _
        %s344 = smul.u32 %s23, 4
        %v345 = vld [vmem:[#allocation2] sm:$0xff]
        %v346 = vld [vmem:[#allocation2 + $0x8] sm:$0xff]
        %347 = vst [vmem:[%s264] sm:$0xff] %v345
        %348 = vst [vmem:[%s264 + $0x8] sm:$0xff] %v346
        %v349 = vld [vmem:[#allocation2] sm:$0xff]
        %v350 = vld [vmem:[#allocation2 + $0x8] sm:$0xff]
        %v351 = vpack.c.bf16 %v350, %v349
        %s352 = sld [smem:[#allocation6 + %s344]]
        %v353 = vld [vmem:[%s6] sm:$0x3]
        %v354 = vstv %s352
        %v355 = vmul.f32 %v354, %v353
        %v356 = vld [vmem:[%s7] sm:$0x3]
        %v357 = vadd.f32 %v355, %v356
        %v358 = vld [vmem:[#allocation3] sm:$0xff]
        %v359 = vld [vmem:[#allocation3 + $0x8] sm:$0xff]
        %v360 = vld [vmem:[#allocation3 + $0x10] sm:$0xff]
        %v361 = vld [vmem:[#allocation3 + $0x18] sm:$0xff]
        %v362 = vld [vmem:[#allocation3 + $0x20] sm:$0xff]
        %v363 = vld [vmem:[#allocation3 + $0x28] sm:$0xff]
        %v364 = vld [vmem:[#allocation3 + $0x30] sm:$0xff]
        %v365 = vld [vmem:[#allocation3 + $0x38] sm:$0xff]
        %v366 = vld [vmem:[#allocation3 + $0x40] sm:$0xff]
        %v367 = vld [vmem:[#allocation3 + $0x48] sm:$0xff]
        %v368 = vld [vmem:[#allocation3 + $0x50] sm:$0xff]
        %v369 = vld [vmem:[#allocation3 + $0x58] sm:$0xff]
        %v370 = vld [vmem:[#allocation3 + $0x60] sm:$0xff]
        %v371 = vld [vmem:[#allocation3 + $0x68] sm:$0xff]
        %v372 = vld [vmem:[#allocation3 + $0x70] sm:$0xff]
        %v373 = vld [vmem:[#allocation3 + $0x78] sm:$0xff]
        %v375 = vperm.slane %v357, 0
        %v376 = vperm.slane %v357, 1
        %v395 = vunpack.c.l.b16 %v358
        %v396 = vunpack.c.h.b16 %v358
        %v397 = vunpack.c.l.b16 %v359
        %v398 = vunpack.c.h.b16 %v359
        %v399 = vunpack.c.l.b16 %v360
        %v400 = vunpack.c.h.b16 %v360
        %v401 = vunpack.c.l.b16 %v361
        %v402 = vunpack.c.h.b16 %v361
        %v403 = vunpack.c.l.b16 %v362
        %v404 = vunpack.c.h.b16 %v362
        %v405 = vunpack.c.l.b16 %v363
        %v406 = vunpack.c.h.b16 %v363
        %v407 = vunpack.c.l.b16 %v364
        %v408 = vunpack.c.h.b16 %v364
        %v409 = vunpack.c.l.b16 %v365
        %v410 = vunpack.c.h.b16 %v365
        %v411 = vunpack.c.l.b16 %v366
        %v412 = vunpack.c.h.b16 %v366
        %v413 = vunpack.c.l.b16 %v367
        %v414 = vunpack.c.h.b16 %v367
        %v415 = vunpack.c.l.b16 %v368
        %v416 = vunpack.c.h.b16 %v368
        %v417 = vunpack.c.l.b16 %v369
        %v418 = vunpack.c.h.b16 %v369
        %v419 = vunpack.c.l.b16 %v370
        %v420 = vunpack.c.h.b16 %v370
        %v421 = vunpack.c.l.b16 %v371
        %v422 = vunpack.c.h.b16 %v371
        %v423 = vunpack.c.l.b16 %v372
        %v424 = vunpack.c.h.b16 %v372
        %v425 = vunpack.c.l.b16 %v373
        %v426 = vunpack.c.h.b16 %v373
        %v427 = vpack.c.b16 %v397, %v395
        %v428 = vpack.c.b16 %v398, %v396
        %v429 = vpack.c.b16 %v401, %v399
        %v430 = vpack.c.b16 %v402, %v400
        %v431 = vpack.c.b16 %v405, %v403
        %v432 = vpack.c.b16 %v406, %v404
        %v433 = vpack.c.b16 %v409, %v407
        %v434 = vpack.c.b16 %v410, %v408
        %v435 = vpack.c.b16 %v413, %v411
        %v436 = vpack.c.b16 %v414, %v412
        %v437 = vpack.c.b16 %v417, %v415
        %v438 = vpack.c.b16 %v418, %v416
        %v439 = vpack.c.b16 %v421, %v419
        %v440 = vpack.c.b16 %v422, %v420
        %v441 = vpack.c.b16 %v425, %v423
        %v442 = vpack.c.b16 %v426, %v424
        %459 = vmatpush.bf16.msra.mxu0 %v441
        %460 = vmatpush.bf16.msra.mxu0 %v439
        %461 = vmatpush.bf16.msra.mxu0 %v437
        %462 = vmatpush.bf16.msra.mxu0 %v435
        %463 = vmatpush.bf16.msra.mxu0 %v433
        %464 = vmatpush.bf16.msra.mxu0 %v431
        %465 = vmatpush.bf16.msra.mxu0 %v429
        %466 = vmatpush.bf16.msra.mxu0 %v427
        %467 = vmatmul.bf16.gmra.mxu0 %v351
        %v468 = vpop.f32.mrf.mxu0
        %v469 = vadd.f32 %v375, %v468
        %v470 = vpop.f32.mrf.mxu0
        %v471 = vadd.f32 %v375, %v470
        %472 = vdwg.mxu0
        %473 = vmatpush.bf16.msra.mxu0 %v442
        %474 = vmatpush.bf16.msra.mxu0 %v440
        %475 = vmatpush.bf16.msra.mxu0 %v438
        %476 = vmatpush.bf16.msra.mxu0 %v436
        %477 = vmatpush.bf16.msra.mxu0 %v434
        %478 = vmatpush.bf16.msra.mxu0 %v432
        %479 = vmatpush.bf16.msra.mxu0 %v430
        %480 = vmatpush.bf16.msra.mxu0 %v428
        %481 = vmatmul.bf16.gmra.mxu0 %v351
        %v482 = vpop.f32.mrf.mxu0
        %v483 = vadd.f32 %v376, %v482
        %v484 = vpop.f32.mrf.mxu0
        %v485 = vadd.f32 %v376, %v484
        %486 = vdwg.mxu0
        %v487 = vtanh.pop %v469
        %v488 = vtanh.pop %v483
        %v489 = vtanh.pop %v471
        %v490 = vtanh.pop %v485
        %v491 = vpack.c.bf16 %v489, %v487
        %v492 = vpack.c.bf16 %v490, %v488
        %v493 = vld [vmem:[#allocation4] sm:$0xff]
        %v494 = vld [vmem:[#allocation4 + $0x8] sm:$0xff]
        %v495 = vld [vmem:[#allocation4 + $0x10] sm:$0xff]
        %v496 = vld [vmem:[#allocation4 + $0x18] sm:$0xff]
        %v497 = vld [vmem:[#allocation4 + $0x20] sm:$0xff]
        %v498 = vld [vmem:[#allocation4 + $0x28] sm:$0xff]
        %v499 = vld [vmem:[#allocation4 + $0x30] sm:$0xff]
        %v500 = vld [vmem:[#allocation4 + $0x38] sm:$0xff]
        %v501 = vld [vmem:[#allocation4 + $0x40] sm:$0xff]
        %v502 = vld [vmem:[#allocation4 + $0x48] sm:$0xff]
        %v503 = vld [vmem:[#allocation4 + $0x50] sm:$0xff]
        %v504 = vld [vmem:[#allocation4 + $0x58] sm:$0xff]
        %v505 = vld [vmem:[#allocation4 + $0x60] sm:$0xff]
        %v506 = vld [vmem:[#allocation4 + $0x68] sm:$0xff]
        %v507 = vld [vmem:[#allocation4 + $0x70] sm:$0xff]
        %v508 = vld [vmem:[#allocation4 + $0x78] sm:$0xff]
        %v509 = vld [vmem:[#allocation4 + $0x80] sm:$0xff]
        %v510 = vld [vmem:[#allocation4 + $0x88] sm:$0xff]
        %v511 = vld [vmem:[#allocation4 + $0x90] sm:$0xff]
        %v512 = vld [vmem:[#allocation4 + $0x98] sm:$0xff]
        %v513 = vld [vmem:[#allocation4 + $0xa0] sm:$0xff]
        %v514 = vld [vmem:[#allocation4 + $0xa8] sm:$0xff]
        %v515 = vld [vmem:[#allocation4 + $0xb0] sm:$0xff]
        %v516 = vld [vmem:[#allocation4 + $0xb8] sm:$0xff]
        %v517 = vld [vmem:[#allocation4 + $0xc0] sm:$0xff]
        %v518 = vld [vmem:[#allocation4 + $0xc8] sm:$0xff]
        %v519 = vld [vmem:[#allocation4 + $0xd0] sm:$0xff]
        %v520 = vld [vmem:[#allocation4 + $0xd8] sm:$0xff]
        %v521 = vld [vmem:[#allocation4 + $0xe0] sm:$0xff]
        %v522 = vld [vmem:[#allocation4 + $0xe8] sm:$0xff]
        %v523 = vld [vmem:[#allocation4 + $0xf0] sm:$0xff]
        %v524 = vld [vmem:[#allocation4 + $0xf8] sm:$0xff]
        %v525 = vld [vmem:[%s8] sm:$0x3]
        %v527 = vperm.slane %v525, 0
        %v528 = vperm.slane %v525, 1
        %v563 = vunpack.c.l.b16 %v493
        %v564 = vunpack.c.h.b16 %v493
        %v565 = vunpack.c.l.b16 %v494
        %v566 = vunpack.c.h.b16 %v494
        %v567 = vunpack.c.l.b16 %v495
        %v568 = vunpack.c.h.b16 %v495
        %v569 = vunpack.c.l.b16 %v496
        %v570 = vunpack.c.h.b16 %v496
        %v571 = vunpack.c.l.b16 %v497
        %v572 = vunpack.c.h.b16 %v497
        %v573 = vunpack.c.l.b16 %v498
        %v574 = vunpack.c.h.b16 %v498
        %v575 = vunpack.c.l.b16 %v499
        %v576 = vunpack.c.h.b16 %v499
        %v577 = vunpack.c.l.b16 %v500
        %v578 = vunpack.c.h.b16 %v500
        %v579 = vunpack.c.l.b16 %v501
        %v580 = vunpack.c.h.b16 %v501
        %v581 = vunpack.c.l.b16 %v502
        %v582 = vunpack.c.h.b16 %v502
        %v583 = vunpack.c.l.b16 %v503
        %v584 = vunpack.c.h.b16 %v503
        %v585 = vunpack.c.l.b16 %v504
        %v586 = vunpack.c.h.b16 %v504
        %v587 = vunpack.c.l.b16 %v505
        %v588 = vunpack.c.h.b16 %v505
        %v589 = vunpack.c.l.b16 %v506
        %v590 = vunpack.c.h.b16 %v506
        %v591 = vunpack.c.l.b16 %v507
        %v592 = vunpack.c.h.b16 %v507
        %v593 = vunpack.c.l.b16 %v508
        %v594 = vunpack.c.h.b16 %v508
        %v595 = vunpack.c.l.b16 %v509
        %v596 = vunpack.c.h.b16 %v509
        %v597 = vunpack.c.l.b16 %v510
        %v598 = vunpack.c.h.b16 %v510
        %v599 = vunpack.c.l.b16 %v511
        %v600 = vunpack.c.h.b16 %v511
        %v601 = vunpack.c.l.b16 %v512
        %v602 = vunpack.c.h.b16 %v512
        %v603 = vunpack.c.l.b16 %v513
        %v604 = vunpack.c.h.b16 %v513
        %v605 = vunpack.c.l.b16 %v514
        %v606 = vunpack.c.h.b16 %v514
        %v607 = vunpack.c.l.b16 %v515
        %v608 = vunpack.c.h.b16 %v515
        %v609 = vunpack.c.l.b16 %v516
        %v610 = vunpack.c.h.b16 %v516
        %v611 = vunpack.c.l.b16 %v517
        %v612 = vunpack.c.h.b16 %v517
        %v613 = vunpack.c.l.b16 %v518
        %v614 = vunpack.c.h.b16 %v518
        %v615 = vunpack.c.l.b16 %v519
        %v616 = vunpack.c.h.b16 %v519
        %v617 = vunpack.c.l.b16 %v520
        %v618 = vunpack.c.h.b16 %v520
        %v619 = vunpack.c.l.b16 %v521
        %v620 = vunpack.c.h.b16 %v521
        %v621 = vunpack.c.l.b16 %v522
        %v622 = vunpack.c.h.b16 %v522
        %v623 = vunpack.c.l.b16 %v523
        %v624 = vunpack.c.h.b16 %v523
        %v625 = vunpack.c.l.b16 %v524
        %v626 = vunpack.c.h.b16 %v524
        %v627 = vpack.c.b16 %v565, %v563
        %v628 = vpack.c.b16 %v566, %v564
        %v629 = vpack.c.b16 %v569, %v567
        %v630 = vpack.c.b16 %v570, %v568
        %v631 = vpack.c.b16 %v573, %v571
        %v632 = vpack.c.b16 %v574, %v572
        %v633 = vpack.c.b16 %v577, %v575
        %v634 = vpack.c.b16 %v578, %v576
        %v635 = vpack.c.b16 %v581, %v579
        %v636 = vpack.c.b16 %v582, %v580
        %v637 = vpack.c.b16 %v585, %v583
        %v638 = vpack.c.b16 %v586, %v584
        %v639 = vpack.c.b16 %v589, %v587
        %v640 = vpack.c.b16 %v590, %v588
        %v641 = vpack.c.b16 %v593, %v591
        %v642 = vpack.c.b16 %v594, %v592
        %v643 = vpack.c.b16 %v597, %v595
        %v644 = vpack.c.b16 %v598, %v596
        %v645 = vpack.c.b16 %v601, %v599
        %v646 = vpack.c.b16 %v602, %v600
        %v647 = vpack.c.b16 %v605, %v603
        %v648 = vpack.c.b16 %v606, %v604
        %v649 = vpack.c.b16 %v609, %v607
        %v650 = vpack.c.b16 %v610, %v608
        %v651 = vpack.c.b16 %v613, %v611
        %v652 = vpack.c.b16 %v614, %v612
        %v653 = vpack.c.b16 %v617, %v615
        %v654 = vpack.c.b16 %v618, %v616
        %v655 = vpack.c.b16 %v621, %v619
        %v656 = vpack.c.b16 %v622, %v620
        %v657 = vpack.c.b16 %v625, %v623
        %v658 = vpack.c.b16 %v626, %v624
        %691 = vmatpush.bf16.msra.mxu0 %v641
        %692 = vmatpush.bf16.msra.mxu0 %v639
        %693 = vmatpush.bf16.msra.mxu0 %v637
        %694 = vmatpush.bf16.msra.mxu0 %v635
        %695 = vmatpush.bf16.msra.mxu0 %v633
        %696 = vmatpush.bf16.msra.mxu0 %v631
        %697 = vmatpush.bf16.msra.mxu0 %v629
        %698 = vmatpush.bf16.msra.mxu0 %v627
        %699 = vmatmul.bf16.gmra.mxu0 %v491
        %v700 = vpop.f32.mrf.mxu0
        %v701 = vadd.f32 %v527, %v700
        %v702 = vpop.f32.mrf.mxu0
        %v703 = vadd.f32 %v527, %v702
        %704 = vdwg.mxu0
        %705 = vmatpush.bf16.msra.mxu0 %v657
        %706 = vmatpush.bf16.msra.mxu0 %v655
        %707 = vmatpush.bf16.msra.mxu0 %v653
        %708 = vmatpush.bf16.msra.mxu0 %v651
        %709 = vmatpush.bf16.msra.mxu0 %v649
        %710 = vmatpush.bf16.msra.mxu0 %v647
        %711 = vmatpush.bf16.msra.mxu0 %v645
        %712 = vmatpush.bf16.msra.mxu0 %v643
        %713 = vmatmul.bf16.gmra.mxu0 %v492
        %v714 = vpop.f32.mrf.mxu0
        %v715 = vadd.f32 %v701, %v714
        %v716 = vpop.f32.mrf.mxu0
        %v717 = vadd.f32 %v703, %v716
        %718 = vdwg.mxu0
        %719 = vmatpush.bf16.msra.mxu0 %v642
        %720 = vmatpush.bf16.msra.mxu0 %v640
        %721 = vmatpush.bf16.msra.mxu0 %v638
        %722 = vmatpush.bf16.msra.mxu0 %v636
        %723 = vmatpush.bf16.msra.mxu0 %v634
        %724 = vmatpush.bf16.msra.mxu0 %v632
        %725 = vmatpush.bf16.msra.mxu0 %v630
        %726 = vmatpush.bf16.msra.mxu0 %v628
        %727 = vmatmul.bf16.gmra.mxu0 %v491
        %v728 = vpop.f32.mrf.mxu0
        %v729 = vadd.f32 %v528, %v728
        %v730 = vpop.f32.mrf.mxu0
        %v731 = vadd.f32 %v528, %v730
        %732 = vdwg.mxu0
        %733 = vmatpush.bf16.msra.mxu0 %v658
        %734 = vmatpush.bf16.msra.mxu0 %v656
        %735 = vmatpush.bf16.msra.mxu0 %v654
        %736 = vmatpush.bf16.msra.mxu0 %v652
        %737 = vmatpush.bf16.msra.mxu0 %v650
        %738 = vmatpush.bf16.msra.mxu0 %v648
        %739 = vmatpush.bf16.msra.mxu0 %v646
        %740 = vmatpush.bf16.msra.mxu0 %v644
        %741 = vmatmul.bf16.gmra.mxu0 %v492
        %v742 = vpop.f32.mrf.mxu0
        %v743 = vadd.f32 %v729, %v742
        %v744 = vpop.f32.mrf.mxu0
        %v745 = vadd.f32 %v731, %v744
        %746 = vdwg.mxu0
        %v747 = vtanh.pop %v715
        %v748 = vtanh.pop %v743
        %v749 = vtanh.pop %v717
        %v750 = vtanh.pop %v745
        %v751 = vpack.c.bf16 %v749, %v747
        %v752 = vpack.c.bf16 %v750, %v748
        %v753 = vld [vmem:[#allocation5] sm:$0xf]
        %v754 = vld [vmem:[#allocation5 + $0x4] sm:$0xf]
        %v755 = vld [vmem:[#allocation5 + $0x8] sm:$0xf]
        %v756 = vld [vmem:[#allocation5 + $0xc] sm:$0xf]
        %v757 = vld [vmem:[#allocation5 + $0x10] sm:$0xf]
        %v758 = vld [vmem:[#allocation5 + $0x14] sm:$0xf]
        %v759 = vld [vmem:[#allocation5 + $0x18] sm:$0xf]
        %v760 = vld [vmem:[#allocation5 + $0x1c] sm:$0xf]
        %v761 = vld [vmem:[#allocation5 + $0x20] sm:$0xf]
        %v762 = vld [vmem:[#allocation5 + $0x24] sm:$0xf]
        %v763 = vld [vmem:[#allocation5 + $0x28] sm:$0xf]
        %v764 = vld [vmem:[#allocation5 + $0x2c] sm:$0xf]
        %v765 = vld [vmem:[#allocation5 + $0x30] sm:$0xf]
        %v766 = vld [vmem:[#allocation5 + $0x34] sm:$0xf]
        %v767 = vld [vmem:[#allocation5 + $0x38] sm:$0xf]
        %v768 = vld [vmem:[#allocation5 + $0x3c] sm:$0xf]
        %v769 = vld [vmem:[#allocation5 + $0x40] sm:$0xf]
        %v770 = vld [vmem:[#allocation5 + $0x44] sm:$0xf]
        %v771 = vld [vmem:[#allocation5 + $0x48] sm:$0xf]
        %v772 = vld [vmem:[#allocation5 + $0x4c] sm:$0xf]
        %v773 = vld [vmem:[#allocation5 + $0x50] sm:$0xf]
        %v774 = vld [vmem:[#allocation5 + $0x54] sm:$0xf]
        %v775 = vld [vmem:[#allocation5 + $0x58] sm:$0xf]
        %v776 = vld [vmem:[#allocation5 + $0x5c] sm:$0xf]
        %v777 = vld [vmem:[#allocation5 + $0x60] sm:$0xf]
        %v778 = vld [vmem:[#allocation5 + $0x64] sm:$0xf]
        %v779 = vld [vmem:[#allocation5 + $0x68] sm:$0xf]
        %v780 = vld [vmem:[#allocation5 + $0x6c] sm:$0xf]
        %v781 = vld [vmem:[#allocation5 + $0x70] sm:$0xf]
        %v782 = vld [vmem:[#allocation5 + $0x74] sm:$0xf]
        %v783 = vld [vmem:[#allocation5 + $0x78] sm:$0xf]
        %v784 = vld [vmem:[#allocation5 + $0x7c] sm:$0xf]
        %v785 = vld [vmem:[%s9] sm:$0x1]
        %v787 = vperm.slane %v785, 0
        %v821 = vunpack.c.l.b16 %v753
        %v822 = vunpack.c.l.b16 %v754
        %v823 = vunpack.c.l.b16 %v755
        %v824 = vunpack.c.l.b16 %v756
        %v825 = vunpack.c.l.b16 %v757
        %v826 = vunpack.c.l.b16 %v758
        %v827 = vunpack.c.l.b16 %v759
        %v828 = vunpack.c.l.b16 %v760
        %v829 = vunpack.c.l.b16 %v761
        %v830 = vunpack.c.l.b16 %v762
        %v831 = vunpack.c.l.b16 %v763
        %v832 = vunpack.c.l.b16 %v764
        %v833 = vunpack.c.l.b16 %v765
        %v834 = vunpack.c.l.b16 %v766
        %v835 = vunpack.c.l.b16 %v767
        %v836 = vunpack.c.l.b16 %v768
        %v837 = vunpack.c.l.b16 %v769
        %v838 = vunpack.c.l.b16 %v770
        %v839 = vunpack.c.l.b16 %v771
        %v840 = vunpack.c.l.b16 %v772
        %v841 = vunpack.c.l.b16 %v773
        %v842 = vunpack.c.l.b16 %v774
        %v843 = vunpack.c.l.b16 %v775
        %v844 = vunpack.c.l.b16 %v776
        %v845 = vunpack.c.l.b16 %v777
        %v846 = vunpack.c.l.b16 %v778
        %v847 = vunpack.c.l.b16 %v779
        %v848 = vunpack.c.l.b16 %v780
        %v849 = vunpack.c.l.b16 %v781
        %v850 = vunpack.c.l.b16 %v782
        %v851 = vunpack.c.l.b16 %v783
        %v852 = vunpack.c.l.b16 %v784
        %v853 = vpack.c.b16 %v822, %v821
        %v854 = vpack.c.b16 %v824, %v823
        %v855 = vpack.c.b16 %v826, %v825
        %v856 = vpack.c.b16 %v828, %v827
        %v857 = vpack.c.b16 %v830, %v829
        %v858 = vpack.c.b16 %v832, %v831
        %v859 = vpack.c.b16 %v834, %v833
        %v860 = vpack.c.b16 %v836, %v835
        %v861 = vpack.c.b16 %v838, %v837
        %v862 = vpack.c.b16 %v840, %v839
        %v863 = vpack.c.b16 %v842, %v841
        %v864 = vpack.c.b16 %v844, %v843
        %v865 = vpack.c.b16 %v846, %v845
        %v866 = vpack.c.b16 %v848, %v847
        %v867 = vpack.c.b16 %v850, %v849
        %v868 = vpack.c.b16 %v852, %v851
        %885 = vmatpush.bf16.msra.mxu0 %v860
        %886 = vmatpush.bf16.msra.mxu0 %v859
        %887 = vmatpush.bf16.msra.mxu0 %v858
        %888 = vmatpush.bf16.msra.mxu0 %v857
        %889 = vmatpush.bf16.msra.mxu0 %v856
        %890 = vmatpush.bf16.msra.mxu0 %v855
        %891 = vmatpush.bf16.msra.mxu0 %v854
        %892 = vmatpush.bf16.msra.mxu0 %v853
        %893 = vmatmul.bf16.gmra.mxu0 %v751
        %v894 = vpop.f32.mrf.mxu0
        %v895 = vadd.f32 %v787, %v894
        %v896 = vpop.f32.mrf.mxu0
        %v897 = vadd.f32 %v787, %v896
        %898 = vdwg.mxu0
        %899 = vmatpush.bf16.msra.mxu0 %v868
        %900 = vmatpush.bf16.msra.mxu0 %v867
        %901 = vmatpush.bf16.msra.mxu0 %v866
        %902 = vmatpush.bf16.msra.mxu0 %v865
        %903 = vmatpush.bf16.msra.mxu0 %v864
        %904 = vmatpush.bf16.msra.mxu0 %v863
        %905 = vmatpush.bf16.msra.mxu0 %v862
        %906 = vmatpush.bf16.msra.mxu0 %v861
        %907 = vmatmul.bf16.gmra.mxu0 %v752
        %v908 = vpop.f32.mrf.mxu0
        %v909 = vadd.f32 %v895, %v908
        %v910 = vpop.f32.mrf.mxu0
        %v911 = vadd.f32 %v897, %v910
        %912 = vdwg.mxu0
        %s913 = sld [smem:[#allocation8 + %s344]]
        %v914 = vstv %s913
        %v915 = vmul.f32 %v914, %v909
        %v916 = vmul.f32 %v914, %v911
        %v917 = vadd.f32 %v349, %v915
        %v918 = vadd.f32 %v350, %v916
        %919 = vst [vmem:[#allocation2] sm:$0xff] %v917
        %920 = vst [vmem:[#allocation2 + $0x8] sm:$0xff] %v918
        %s921 = sadd.s32 %s344, 1
        %v922 = vld [vmem:[#allocation2] sm:$0xff]
        %v923 = vld [vmem:[#allocation2 + $0x8] sm:$0xff]
        %s924 = scalar_lea.vmem %s264, 16
        %925 = vst [vmem:[%s924] sm:$0xff] %v922
        %926 = vst [vmem:[%s924 + $0x8] sm:$0xff] %v923
        %v927 = vld [vmem:[#allocation2] sm:$0xff]
        %v928 = vld [vmem:[#allocation2 + $0x8] sm:$0xff]
        %v929 = vpack.c.bf16 %v928, %v927
        %s930 = sld [smem:[#allocation6 + %s921]]
        %v931 = vld [vmem:[%s6] sm:$0x3]
        %v932 = vstv %s930
        %v933 = vmul.f32 %v932, %v931
        %v934 = vld [vmem:[%s7] sm:$0x3]
        %v935 = vadd.f32 %v933, %v934
        %v936 = vld [vmem:[#allocation3] sm:$0xff]
        %v937 = vld [vmem:[#allocation3 + $0x8] sm:$0xff]
        %v938 = vld [vmem:[#allocation3 + $0x10] sm:$0xff]
        %v939 = vld [vmem:[#allocation3 + $0x18] sm:$0xff]
        %v940 = vld [vmem:[#allocation3 + $0x20] sm:$0xff]
        %v941 = vld [vmem:[#allocation3 + $0x28] sm:$0xff]
        %v942 = vld [vmem:[#allocation3 + $0x30] sm:$0xff]
        %v943 = vld [vmem:[#allocation3 + $0x38] sm:$0xff]
        %v944 = vld [vmem:[#allocation3 + $0x40] sm:$0xff]
        %v945 = vld [vmem:[#allocation3 + $0x48] sm:$0xff]
        %v946 = vld [vmem:[#allocation3 + $0x50] sm:$0xff]
        %v947 = vld [vmem:[#allocation3 + $0x58] sm:$0xff]
        %v948 = vld [vmem:[#allocation3 + $0x60] sm:$0xff]
        %v949 = vld [vmem:[#allocation3 + $0x68] sm:$0xff]
        %v950 = vld [vmem:[#allocation3 + $0x70] sm:$0xff]
        %v951 = vld [vmem:[#allocation3 + $0x78] sm:$0xff]
        %v953 = vperm.slane %v935, 0
        %v954 = vperm.slane %v935, 1
        %v973 = vunpack.c.l.b16 %v936
        %v974 = vunpack.c.h.b16 %v936
        %v975 = vunpack.c.l.b16 %v937
        %v976 = vunpack.c.h.b16 %v937
        %v977 = vunpack.c.l.b16 %v938
        %v978 = vunpack.c.h.b16 %v938
        %v979 = vunpack.c.l.b16 %v939
        %v980 = vunpack.c.h.b16 %v939
        %v981 = vunpack.c.l.b16 %v940
        %v982 = vunpack.c.h.b16 %v940
        %v983 = vunpack.c.l.b16 %v941
        %v984 = vunpack.c.h.b16 %v941
        %v985 = vunpack.c.l.b16 %v942
        %v986 = vunpack.c.h.b16 %v942
        %v987 = vunpack.c.l.b16 %v943
        %v988 = vunpack.c.h.b16 %v943
        %v989 = vunpack.c.l.b16 %v944
        %v990 = vunpack.c.h.b16 %v944
        %v991 = vunpack.c.l.b16 %v945
        %v992 = vunpack.c.h.b16 %v945
        %v993 = vunpack.c.l.b16 %v946
        %v994 = vunpack.c.h.b16 %v946
        %v995 = vunpack.c.l.b16 %v947
        %v996 = vunpack.c.h.b16 %v947
        %v997 = vunpack.c.l.b16 %v948
        %v998 = vunpack.c.h.b16 %v948
        %v999 = vunpack.c.l.b16 %v949
        %v1000 = vunpack.c.h.b16 %v949
        %v1001 = vunpack.c.l.b16 %v950
        %v1002 = vunpack.c.h.b16 %v950
        %v1003 = vunpack.c.l.b16 %v951
        %v1004 = vunpack.c.h.b16 %v951
        %v1005 = vpack.c.b16 %v975, %v973
        %v1006 = vpack.c.b16 %v976, %v974
        %v1007 = vpack.c.b16 %v979, %v977
        %v1008 = vpack.c.b16 %v980, %v978
        %v1009 = vpack.c.b16 %v983, %v981
        %v1010 = vpack.c.b16 %v984, %v982
        %v1011 = vpack.c.b16 %v987, %v985
        %v1012 = vpack.c.b16 %v988, %v986
        %v1013 = vpack.c.b16 %v991, %v989
        %v1014 = vpack.c.b16 %v992, %v990
        %v1015 = vpack.c.b16 %v995, %v993
        %v1016 = vpack.c.b16 %v996, %v994
        %v1017 = vpack.c.b16 %v999, %v997
        %v1018 = vpack.c.b16 %v1000, %v998
        %v1019 = vpack.c.b16 %v1003, %v1001
        %v1020 = vpack.c.b16 %v1004, %v1002
        %1037 = vmatpush.bf16.msra.mxu0 %v1019
        %1038 = vmatpush.bf16.msra.mxu0 %v1017
        %1039 = vmatpush.bf16.msra.mxu0 %v1015
        %1040 = vmatpush.bf16.msra.mxu0 %v1013
        %1041 = vmatpush.bf16.msra.mxu0 %v1011
        %1042 = vmatpush.bf16.msra.mxu0 %v1009
        %1043 = vmatpush.bf16.msra.mxu0 %v1007
        %1044 = vmatpush.bf16.msra.mxu0 %v1005
        %1045 = vmatmul.bf16.gmra.mxu0 %v929
        %v1046 = vpop.f32.mrf.mxu0
        %v1047 = vadd.f32 %v953, %v1046
        %v1048 = vpop.f32.mrf.mxu0
        %v1049 = vadd.f32 %v953, %v1048
        %1050 = vdwg.mxu0
        %1051 = vmatpush.bf16.msra.mxu0 %v1020
        %1052 = vmatpush.bf16.msra.mxu0 %v1018
        %1053 = vmatpush.bf16.msra.mxu0 %v1016
        %1054 = vmatpush.bf16.msra.mxu0 %v1014
        %1055 = vmatpush.bf16.msra.mxu0 %v1012
        %1056 = vmatpush.bf16.msra.mxu0 %v1010
        %1057 = vmatpush.bf16.msra.mxu0 %v1008
        %1058 = vmatpush.bf16.msra.mxu0 %v1006
        %1059 = vmatmul.bf16.gmra.mxu0 %v929
        %v1060 = vpop.f32.mrf.mxu0
        %v1061 = vadd.f32 %v954, %v1060
        %v1062 = vpop.f32.mrf.mxu0
        %v1063 = vadd.f32 %v954, %v1062
        %1064 = vdwg.mxu0
        %v1065 = vtanh.pop %v1047
        %v1066 = vtanh.pop %v1061
        %v1067 = vtanh.pop %v1049
        %v1068 = vtanh.pop %v1063
        %v1069 = vpack.c.bf16 %v1067, %v1065
        %v1070 = vpack.c.bf16 %v1068, %v1066
        %v1071 = vld [vmem:[#allocation4] sm:$0xff]
        %v1072 = vld [vmem:[#allocation4 + $0x8] sm:$0xff]
        %v1073 = vld [vmem:[#allocation4 + $0x10] sm:$0xff]
        %v1074 = vld [vmem:[#allocation4 + $0x18] sm:$0xff]
        %v1075 = vld [vmem:[#allocation4 + $0x20] sm:$0xff]
        %v1076 = vld [vmem:[#allocation4 + $0x28] sm:$0xff]
        %v1077 = vld [vmem:[#allocation4 + $0x30] sm:$0xff]
        %v1078 = vld [vmem:[#allocation4 + $0x38] sm:$0xff]
        %v1079 = vld [vmem:[#allocation4 + $0x40] sm:$0xff]
        %v1080 = vld [vmem:[#allocation4 + $0x48] sm:$0xff]
        %v1081 = vld [vmem:[#allocation4 + $0x50] sm:$0xff]
        %v1082 = vld [vmem:[#allocation4 + $0x58] sm:$0xff]
        %v1083 = vld [vmem:[#allocation4 + $0x60] sm:$0xff]
        %v1084 = vld [vmem:[#allocation4 + $0x68] sm:$0xff]
        %v1085 = vld [vmem:[#allocation4 + $0x70] sm:$0xff]
        %v1086 = vld [vmem:[#allocation4 + $0x78] sm:$0xff]
        %v1087 = vld [vmem:[#allocation4 + $0x80] sm:$0xff]
        %v1088 = vld [vmem:[#allocation4 + $0x88] sm:$0xff]
        %v1089 = vld [vmem:[#allocation4 + $0x90] sm:$0xff]
        %v1090 = vld [vmem:[#allocation4 + $0x98] sm:$0xff]
        %v1091 = vld [vmem:[#allocation4 + $0xa0] sm:$0xff]
        %v1092 = vld [vmem:[#allocation4 + $0xa8] sm:$0xff]
        %v1093 = vld [vmem:[#allocation4 + $0xb0] sm:$0xff]
        %v1094 = vld [vmem:[#allocation4 + $0xb8] sm:$0xff]
        %v1095 = vld [vmem:[#allocation4 + $0xc0] sm:$0xff]
        %v1096 = vld [vmem:[#allocation4 + $0xc8] sm:$0xff]
        %v1097 = vld [vmem:[#allocation4 + $0xd0] sm:$0xff]
        %v1098 = vld [vmem:[#allocation4 + $0xd8] sm:$0xff]
        %v1099 = vld [vmem:[#allocation4 + $0xe0] sm:$0xff]
        %v1100 = vld [vmem:[#allocation4 + $0xe8] sm:$0xff]
        %v1101 = vld [vmem:[#allocation4 + $0xf0] sm:$0xff]
        %v1102 = vld [vmem:[#allocation4 + $0xf8] sm:$0xff]
        %v1103 = vld [vmem:[%s8] sm:$0x3]
        %v1105 = vperm.slane %v1103, 0
        %v1106 = vperm.slane %v1103, 1
        %v1141 = vunpack.c.l.b16 %v1071
        %v1142 = vunpack.c.h.b16 %v1071
        %v1143 = vunpack.c.l.b16 %v1072
        %v1144 = vunpack.c.h.b16 %v1072
        %v1145 = vunpack.c.l.b16 %v1073
        %v1146 = vunpack.c.h.b16 %v1073
        %v1147 = vunpack.c.l.b16 %v1074
        %v1148 = vunpack.c.h.b16 %v1074
        %v1149 = vunpack.c.l.b16 %v1075
        %v1150 = vunpack.c.h.b16 %v1075
        %v1151 = vunpack.c.l.b16 %v1076
        %v1152 = vunpack.c.h.b16 %v1076
        %v1153 = vunpack.c.l.b16 %v1077
        %v1154 = vunpack.c.h.b16 %v1077
        %v1155 = vunpack.c.l.b16 %v1078
        %v1156 = vunpack.c.h.b16 %v1078
        %v1157 = vunpack.c.l.b16 %v1079
        %v1158 = vunpack.c.h.b16 %v1079
        %v1159 = vunpack.c.l.b16 %v1080
        %v1160 = vunpack.c.h.b16 %v1080
        %v1161 = vunpack.c.l.b16 %v1081
        %v1162 = vunpack.c.h.b16 %v1081
        %v1163 = vunpack.c.l.b16 %v1082
        %v1164 = vunpack.c.h.b16 %v1082
        %v1165 = vunpack.c.l.b16 %v1083
        %v1166 = vunpack.c.h.b16 %v1083
        %v1167 = vunpack.c.l.b16 %v1084
        %v1168 = vunpack.c.h.b16 %v1084
        %v1169 = vunpack.c.l.b16 %v1085
        %v1170 = vunpack.c.h.b16 %v1085
        %v1171 = vunpack.c.l.b16 %v1086
        %v1172 = vunpack.c.h.b16 %v1086
        %v1173 = vunpack.c.l.b16 %v1087
        %v1174 = vunpack.c.h.b16 %v1087
        %v1175 = vunpack.c.l.b16 %v1088
        %v1176 = vunpack.c.h.b16 %v1088
        %v1177 = vunpack.c.l.b16 %v1089
        %v1178 = vunpack.c.h.b16 %v1089
        %v1179 = vunpack.c.l.b16 %v1090
        %v1180 = vunpack.c.h.b16 %v1090
        %v1181 = vunpack.c.l.b16 %v1091
        %v1182 = vunpack.c.h.b16 %v1091
        %v1183 = vunpack.c.l.b16 %v1092
        %v1184 = vunpack.c.h.b16 %v1092
        %v1185 = vunpack.c.l.b16 %v1093
        %v1186 = vunpack.c.h.b16 %v1093
        %v1187 = vunpack.c.l.b16 %v1094
        %v1188 = vunpack.c.h.b16 %v1094
        %v1189 = vunpack.c.l.b16 %v1095
        %v1190 = vunpack.c.h.b16 %v1095
        %v1191 = vunpack.c.l.b16 %v1096
        %v1192 = vunpack.c.h.b16 %v1096
        %v1193 = vunpack.c.l.b16 %v1097
        %v1194 = vunpack.c.h.b16 %v1097
        %v1195 = vunpack.c.l.b16 %v1098
        %v1196 = vunpack.c.h.b16 %v1098
        %v1197 = vunpack.c.l.b16 %v1099
        %v1198 = vunpack.c.h.b16 %v1099
        %v1199 = vunpack.c.l.b16 %v1100
        %v1200 = vunpack.c.h.b16 %v1100
        %v1201 = vunpack.c.l.b16 %v1101
        %v1202 = vunpack.c.h.b16 %v1101
        %v1203 = vunpack.c.l.b16 %v1102
        %v1204 = vunpack.c.h.b16 %v1102
        %v1205 = vpack.c.b16 %v1143, %v1141
        %v1206 = vpack.c.b16 %v1144, %v1142
        %v1207 = vpack.c.b16 %v1147, %v1145
        %v1208 = vpack.c.b16 %v1148, %v1146
        %v1209 = vpack.c.b16 %v1151, %v1149
        %v1210 = vpack.c.b16 %v1152, %v1150
        %v1211 = vpack.c.b16 %v1155, %v1153
        %v1212 = vpack.c.b16 %v1156, %v1154
        %v1213 = vpack.c.b16 %v1159, %v1157
        %v1214 = vpack.c.b16 %v1160, %v1158
        %v1215 = vpack.c.b16 %v1163, %v1161
        %v1216 = vpack.c.b16 %v1164, %v1162
        %v1217 = vpack.c.b16 %v1167, %v1165
        %v1218 = vpack.c.b16 %v1168, %v1166
        %v1219 = vpack.c.b16 %v1171, %v1169
        %v1220 = vpack.c.b16 %v1172, %v1170
        %v1221 = vpack.c.b16 %v1175, %v1173
        %v1222 = vpack.c.b16 %v1176, %v1174
        %v1223 = vpack.c.b16 %v1179, %v1177
        %v1224 = vpack.c.b16 %v1180, %v1178
        %v1225 = vpack.c.b16 %v1183, %v1181
        %v1226 = vpack.c.b16 %v1184, %v1182
        %v1227 = vpack.c.b16 %v1187, %v1185
        %v1228 = vpack.c.b16 %v1188, %v1186
        %v1229 = vpack.c.b16 %v1191, %v1189
        %v1230 = vpack.c.b16 %v1192, %v1190
        %v1231 = vpack.c.b16 %v1195, %v1193
        %v1232 = vpack.c.b16 %v1196, %v1194
        %v1233 = vpack.c.b16 %v1199, %v1197
        %v1234 = vpack.c.b16 %v1200, %v1198
        %v1235 = vpack.c.b16 %v1203, %v1201
        %v1236 = vpack.c.b16 %v1204, %v1202
        %1269 = vmatpush.bf16.msra.mxu0 %v1219
        %1270 = vmatpush.bf16.msra.mxu0 %v1217
        %1271 = vmatpush.bf16.msra.mxu0 %v1215
        %1272 = vmatpush.bf16.msra.mxu0 %v1213
        %1273 = vmatpush.bf16.msra.mxu0 %v1211
        %1274 = vmatpush.bf16.msra.mxu0 %v1209
        %1275 = vmatpush.bf16.msra.mxu0 %v1207
        %1276 = vmatpush.bf16.msra.mxu0 %v1205
        %1277 = vmatmul.bf16.gmra.mxu0 %v1069
        %v1278 = vpop.f32.mrf.mxu0
        %v1279 = vadd.f32 %v1105, %v1278
        %v1280 = vpop.f32.mrf.mxu0
        %v1281 = vadd.f32 %v1105, %v1280
        %1282 = vdwg.mxu0
        %1283 = vmatpush.bf16.msra.mxu0 %v1235
        %1284 = vmatpush.bf16.msra.mxu0 %v1233
        %1285 = vmatpush.bf16.msra.mxu0 %v1231
        %1286 = vmatpush.bf16.msra.mxu0 %v1229
        %1287 = vmatpush.bf16.msra.mxu0 %v1227
        %1288 = vmatpush.bf16.msra.mxu0 %v1225
        %1289 = vmatpush.bf16.msra.mxu0 %v1223
        %1290 = vmatpush.bf16.msra.mxu0 %v1221
        %1291 = vmatmul.bf16.gmra.mxu0 %v1070
        %v1292 = vpop.f32.mrf.mxu0
        %v1293 = vadd.f32 %v1279, %v1292
        %v1294 = vpop.f32.mrf.mxu0
        %v1295 = vadd.f32 %v1281, %v1294
        %1296 = vdwg.mxu0
        %1297 = vmatpush.bf16.msra.mxu0 %v1220
        %1298 = vmatpush.bf16.msra.mxu0 %v1218
        %1299 = vmatpush.bf16.msra.mxu0 %v1216
        %1300 = vmatpush.bf16.msra.mxu0 %v1214
        %1301 = vmatpush.bf16.msra.mxu0 %v1212
        %1302 = vmatpush.bf16.msra.mxu0 %v1210
        %1303 = vmatpush.bf16.msra.mxu0 %v1208
        %1304 = vmatpush.bf16.msra.mxu0 %v1206
        %1305 = vmatmul.bf16.gmra.mxu0 %v1069
        %v1306 = vpop.f32.mrf.mxu0
        %v1307 = vadd.f32 %v1106, %v1306
        %v1308 = vpop.f32.mrf.mxu0
        %v1309 = vadd.f32 %v1106, %v1308
        %1310 = vdwg.mxu0
        %1311 = vmatpush.bf16.msra.mxu0 %v1236
        %1312 = vmatpush.bf16.msra.mxu0 %v1234
        %1313 = vmatpush.bf16.msra.mxu0 %v1232
        %1314 = vmatpush.bf16.msra.mxu0 %v1230
        %1315 = vmatpush.bf16.msra.mxu0 %v1228
        %1316 = vmatpush.bf16.msra.mxu0 %v1226
        %1317 = vmatpush.bf16.msra.mxu0 %v1224
        %1318 = vmatpush.bf16.msra.mxu0 %v1222
        %1319 = vmatmul.bf16.gmra.mxu0 %v1070
        %v1320 = vpop.f32.mrf.mxu0
        %v1321 = vadd.f32 %v1307, %v1320
        %v1322 = vpop.f32.mrf.mxu0
        %v1323 = vadd.f32 %v1309, %v1322
        %1324 = vdwg.mxu0
        %v1325 = vtanh.pop %v1293
        %v1326 = vtanh.pop %v1321
        %v1327 = vtanh.pop %v1295
        %v1328 = vtanh.pop %v1323
        %v1329 = vpack.c.bf16 %v1327, %v1325
        %v1330 = vpack.c.bf16 %v1328, %v1326
        %v1331 = vld [vmem:[#allocation5] sm:$0xf]
        %v1332 = vld [vmem:[#allocation5 + $0x4] sm:$0xf]
        %v1333 = vld [vmem:[#allocation5 + $0x8] sm:$0xf]
        %v1334 = vld [vmem:[#allocation5 + $0xc] sm:$0xf]
        %v1335 = vld [vmem:[#allocation5 + $0x10] sm:$0xf]
        %v1336 = vld [vmem:[#allocation5 + $0x14] sm:$0xf]
        %v1337 = vld [vmem:[#allocation5 + $0x18] sm:$0xf]
        %v1338 = vld [vmem:[#allocation5 + $0x1c] sm:$0xf]
        %v1339 = vld [vmem:[#allocation5 + $0x20] sm:$0xf]
        %v1340 = vld [vmem:[#allocation5 + $0x24] sm:$0xf]
        %v1341 = vld [vmem:[#allocation5 + $0x28] sm:$0xf]
        %v1342 = vld [vmem:[#allocation5 + $0x2c] sm:$0xf]
        %v1343 = vld [vmem:[#allocation5 + $0x30] sm:$0xf]
        %v1344 = vld [vmem:[#allocation5 + $0x34] sm:$0xf]
        %v1345 = vld [vmem:[#allocation5 + $0x38] sm:$0xf]
        %v1346 = vld [vmem:[#allocation5 + $0x3c] sm:$0xf]
        %v1347 = vld [vmem:[#allocation5 + $0x40] sm:$0xf]
        %v1348 = vld [vmem:[#allocation5 + $0x44] sm:$0xf]
        %v1349 = vld [vmem:[#allocation5 + $0x48] sm:$0xf]
        %v1350 = vld [vmem:[#allocation5 + $0x4c] sm:$0xf]
        %v1351 = vld [vmem:[#allocation5 + $0x50] sm:$0xf]
        %v1352 = vld [vmem:[#allocation5 + $0x54] sm:$0xf]
        %v1353 = vld [vmem:[#allocation5 + $0x58] sm:$0xf]
        %v1354 = vld [vmem:[#allocation5 + $0x5c] sm:$0xf]
        %v1355 = vld [vmem:[#allocation5 + $0x60] sm:$0xf]
        %v1356 = vld [vmem:[#allocation5 + $0x64] sm:$0xf]
        %v1357 = vld [vmem:[#allocation5 + $0x68] sm:$0xf]
        %v1358 = vld [vmem:[#allocation5 + $0x6c] sm:$0xf]
        %v1359 = vld [vmem:[#allocation5 + $0x70] sm:$0xf]
        %v1360 = vld [vmem:[#allocation5 + $0x74] sm:$0xf]
        %v1361 = vld [vmem:[#allocation5 + $0x78] sm:$0xf]
        %v1362 = vld [vmem:[#allocation5 + $0x7c] sm:$0xf]
        %v1363 = vld [vmem:[%s9] sm:$0x1]
        %v1365 = vperm.slane %v1363, 0
        %v1399 = vunpack.c.l.b16 %v1331
        %v1400 = vunpack.c.l.b16 %v1332
        %v1401 = vunpack.c.l.b16 %v1333
        %v1402 = vunpack.c.l.b16 %v1334
        %v1403 = vunpack.c.l.b16 %v1335
        %v1404 = vunpack.c.l.b16 %v1336
        %v1405 = vunpack.c.l.b16 %v1337
        %v1406 = vunpack.c.l.b16 %v1338
        %v1407 = vunpack.c.l.b16 %v1339
        %v1408 = vunpack.c.l.b16 %v1340
        %v1409 = vunpack.c.l.b16 %v1341
        %v1410 = vunpack.c.l.b16 %v1342
        %v1411 = vunpack.c.l.b16 %v1343
        %v1412 = vunpack.c.l.b16 %v1344
        %v1413 = vunpack.c.l.b16 %v1345
        %v1414 = vunpack.c.l.b16 %v1346
        %v1415 = vunpack.c.l.b16 %v1347
        %v1416 = vunpack.c.l.b16 %v1348
        %v1417 = vunpack.c.l.b16 %v1349
        %v1418 = vunpack.c.l.b16 %v1350
        %v1419 = vunpack.c.l.b16 %v1351
        %v1420 = vunpack.c.l.b16 %v1352
        %v1421 = vunpack.c.l.b16 %v1353
        %v1422 = vunpack.c.l.b16 %v1354
        %v1423 = vunpack.c.l.b16 %v1355
        %v1424 = vunpack.c.l.b16 %v1356
        %v1425 = vunpack.c.l.b16 %v1357
        %v1426 = vunpack.c.l.b16 %v1358
        %v1427 = vunpack.c.l.b16 %v1359
        %v1428 = vunpack.c.l.b16 %v1360
        %v1429 = vunpack.c.l.b16 %v1361
        %v1430 = vunpack.c.l.b16 %v1362
        %v1431 = vpack.c.b16 %v1400, %v1399
        %v1432 = vpack.c.b16 %v1402, %v1401
        %v1433 = vpack.c.b16 %v1404, %v1403
        %v1434 = vpack.c.b16 %v1406, %v1405
        %v1435 = vpack.c.b16 %v1408, %v1407
        %v1436 = vpack.c.b16 %v1410, %v1409
        %v1437 = vpack.c.b16 %v1412, %v1411
        %v1438 = vpack.c.b16 %v1414, %v1413
        %v1439 = vpack.c.b16 %v1416, %v1415
        %v1440 = vpack.c.b16 %v1418, %v1417
        %v1441 = vpack.c.b16 %v1420, %v1419
        %v1442 = vpack.c.b16 %v1422, %v1421
        %v1443 = vpack.c.b16 %v1424, %v1423
        %v1444 = vpack.c.b16 %v1426, %v1425
        %v1445 = vpack.c.b16 %v1428, %v1427
        %v1446 = vpack.c.b16 %v1430, %v1429
        %1463 = vmatpush.bf16.msra.mxu0 %v1438
        %1464 = vmatpush.bf16.msra.mxu0 %v1437
        %1465 = vmatpush.bf16.msra.mxu0 %v1436
        %1466 = vmatpush.bf16.msra.mxu0 %v1435
        %1467 = vmatpush.bf16.msra.mxu0 %v1434
        %1468 = vmatpush.bf16.msra.mxu0 %v1433
        %1469 = vmatpush.bf16.msra.mxu0 %v1432
        %1470 = vmatpush.bf16.msra.mxu0 %v1431
        %1471 = vmatmul.bf16.gmra.mxu0 %v1329
        %v1472 = vpop.f32.mrf.mxu0
        %v1473 = vadd.f32 %v1365, %v1472
        %v1474 = vpop.f32.mrf.mxu0
        %v1475 = vadd.f32 %v1365, %v1474
        %1476 = vdwg.mxu0
        %1477 = vmatpush.bf16.msra.mxu0 %v1446
        %1478 = vmatpush.bf16.msra.mxu0 %v1445
        %1479 = vmatpush.bf16.msra.mxu0 %v1444
        %1480 = vmatpush.bf16.msra.mxu0 %v1443
        %1481 = vmatpush.bf16.msra.mxu0 %v1442
        %1482 = vmatpush.bf16.msra.mxu0 %v1441
        %1483 = vmatpush.bf16.msra.mxu0 %v1440
        %1484 = vmatpush.bf16.msra.mxu0 %v1439
        %1485 = vmatmul.bf16.gmra.mxu0 %v1330
        %v1486 = vpop.f32.mrf.mxu0
        %v1487 = vadd.f32 %v1473, %v1486
        %v1488 = vpop.f32.mrf.mxu0
        %v1489 = vadd.f32 %v1475, %v1488
        %1490 = vdwg.mxu0
        %s1491 = sld [smem:[#allocation8 + %s921]]
        %v1492 = vstv %s1491
        %v1493 = vmul.f32 %v1492, %v1487
        %v1494 = vmul.f32 %v1492, %v1489
        %v1495 = vadd.f32 %v927, %v1493
        %v1496 = vadd.f32 %v928, %v1494
        %1497 = vst [vmem:[#allocation2] sm:$0xff] %v1495
        %1498 = vst [vmem:[#allocation2 + $0x8] sm:$0xff] %v1496
        %s1499 = sadd.s32 %s344, 2
        %v1500 = vld [vmem:[#allocation2] sm:$0xff]
        %v1501 = vld [vmem:[#allocation2 + $0x8] sm:$0xff]
        %s1502 = scalar_lea.vmem %s264, 32
        %1503 = vst [vmem:[%s1502] sm:$0xff] %v1500
        %1504 = vst [vmem:[%s1502 + $0x8] sm:$0xff] %v1501
        %v1505 = vld [vmem:[#allocation2] sm:$0xff]
        %v1506 = vld [vmem:[#allocation2 + $0x8] sm:$0xff]
        %v1507 = vpack.c.bf16 %v1506, %v1505
        %s1508 = sld [smem:[#allocation6 + %s1499]]
        %v1509 = vld [vmem:[%s6] sm:$0x3]
        %v1510 = vstv %s1508
        %v1511 = vmul.f32 %v1510, %v1509
        %v1512 = vld [vmem:[%s7] sm:$0x3]
        %v1513 = vadd.f32 %v1511, %v1512
        %v1514 = vld [vmem:[#allocation3] sm:$0xff]
        %v1515 = vld [vmem:[#allocation3 + $0x8] sm:$0xff]
        %v1516 = vld [vmem:[#allocation3 + $0x10] sm:$0xff]
        %v1517 = vld [vmem:[#allocation3 + $0x18] sm:$0xff]
        %v1518 = vld [vmem:[#allocation3 + $0x20] sm:$0xff]
        %v1519 = vld [vmem:[#allocation3 + $0x28] sm:$0xff]
        %v1520 = vld [vmem:[#allocation3 + $0x30] sm:$0xff]
        %v1521 = vld [vmem:[#allocation3 + $0x38] sm:$0xff]
        %v1522 = vld [vmem:[#allocation3 + $0x40] sm:$0xff]
        %v1523 = vld [vmem:[#allocation3 + $0x48] sm:$0xff]
        %v1524 = vld [vmem:[#allocation3 + $0x50] sm:$0xff]
        %v1525 = vld [vmem:[#allocation3 + $0x58] sm:$0xff]
        %v1526 = vld [vmem:[#allocation3 + $0x60] sm:$0xff]
        %v1527 = vld [vmem:[#allocation3 + $0x68] sm:$0xff]
        %v1528 = vld [vmem:[#allocation3 + $0x70] sm:$0xff]
        %v1529 = vld [vmem:[#allocation3 + $0x78] sm:$0xff]
        %v1531 = vperm.slane %v1513, 0
        %v1532 = vperm.slane %v1513, 1
        %v1551 = vunpack.c.l.b16 %v1514
        %v1552 = vunpack.c.h.b16 %v1514
        %v1553 = vunpack.c.l.b16 %v1515
        %v1554 = vunpack.c.h.b16 %v1515
        %v1555 = vunpack.c.l.b16 %v1516
        %v1556 = vunpack.c.h.b16 %v1516
        %v1557 = vunpack.c.l.b16 %v1517
        %v1558 = vunpack.c.h.b16 %v1517
        %v1559 = vunpack.c.l.b16 %v1518
        %v1560 = vunpack.c.h.b16 %v1518
        %v1561 = vunpack.c.l.b16 %v1519
        %v1562 = vunpack.c.h.b16 %v1519
        %v1563 = vunpack.c.l.b16 %v1520
        %v1564 = vunpack.c.h.b16 %v1520
        %v1565 = vunpack.c.l.b16 %v1521
        %v1566 = vunpack.c.h.b16 %v1521
        %v1567 = vunpack.c.l.b16 %v1522
        %v1568 = vunpack.c.h.b16 %v1522
        %v1569 = vunpack.c.l.b16 %v1523
        %v1570 = vunpack.c.h.b16 %v1523
        %v1571 = vunpack.c.l.b16 %v1524
        %v1572 = vunpack.c.h.b16 %v1524
        %v1573 = vunpack.c.l.b16 %v1525
        %v1574 = vunpack.c.h.b16 %v1525
        %v1575 = vunpack.c.l.b16 %v1526
        %v1576 = vunpack.c.h.b16 %v1526
        %v1577 = vunpack.c.l.b16 %v1527
        %v1578 = vunpack.c.h.b16 %v1527
        %v1579 = vunpack.c.l.b16 %v1528
        %v1580 = vunpack.c.h.b16 %v1528
        %v1581 = vunpack.c.l.b16 %v1529
        %v1582 = vunpack.c.h.b16 %v1529
        %v1583 = vpack.c.b16 %v1553, %v1551
        %v1584 = vpack.c.b16 %v1554, %v1552
        %v1585 = vpack.c.b16 %v1557, %v1555
        %v1586 = vpack.c.b16 %v1558, %v1556
        %v1587 = vpack.c.b16 %v1561, %v1559
        %v1588 = vpack.c.b16 %v1562, %v1560
        %v1589 = vpack.c.b16 %v1565, %v1563
        %v1590 = vpack.c.b16 %v1566, %v1564
        %v1591 = vpack.c.b16 %v1569, %v1567
        %v1592 = vpack.c.b16 %v1570, %v1568
        %v1593 = vpack.c.b16 %v1573, %v1571
        %v1594 = vpack.c.b16 %v1574, %v1572
        %v1595 = vpack.c.b16 %v1577, %v1575
        %v1596 = vpack.c.b16 %v1578, %v1576
        %v1597 = vpack.c.b16 %v1581, %v1579
        %v1598 = vpack.c.b16 %v1582, %v1580
        %1615 = vmatpush.bf16.msra.mxu0 %v1597
        %1616 = vmatpush.bf16.msra.mxu0 %v1595
        %1617 = vmatpush.bf16.msra.mxu0 %v1593
        %1618 = vmatpush.bf16.msra.mxu0 %v1591
        %1619 = vmatpush.bf16.msra.mxu0 %v1589
        %1620 = vmatpush.bf16.msra.mxu0 %v1587
        %1621 = vmatpush.bf16.msra.mxu0 %v1585
        %1622 = vmatpush.bf16.msra.mxu0 %v1583
        %1623 = vmatmul.bf16.gmra.mxu0 %v1507
        %v1624 = vpop.f32.mrf.mxu0
        %v1625 = vadd.f32 %v1531, %v1624
        %v1626 = vpop.f32.mrf.mxu0
        %v1627 = vadd.f32 %v1531, %v1626
        %1628 = vdwg.mxu0
        %1629 = vmatpush.bf16.msra.mxu0 %v1598
        %1630 = vmatpush.bf16.msra.mxu0 %v1596
        %1631 = vmatpush.bf16.msra.mxu0 %v1594
        %1632 = vmatpush.bf16.msra.mxu0 %v1592
        %1633 = vmatpush.bf16.msra.mxu0 %v1590
        %1634 = vmatpush.bf16.msra.mxu0 %v1588
        %1635 = vmatpush.bf16.msra.mxu0 %v1586
        %1636 = vmatpush.bf16.msra.mxu0 %v1584
        %1637 = vmatmul.bf16.gmra.mxu0 %v1507
        %v1638 = vpop.f32.mrf.mxu0
        %v1639 = vadd.f32 %v1532, %v1638
        %v1640 = vpop.f32.mrf.mxu0
        %v1641 = vadd.f32 %v1532, %v1640
        %1642 = vdwg.mxu0
        %v1643 = vtanh.pop %v1625
        %v1644 = vtanh.pop %v1639
        %v1645 = vtanh.pop %v1627
        %v1646 = vtanh.pop %v1641
        %v1647 = vpack.c.bf16 %v1645, %v1643
        %v1648 = vpack.c.bf16 %v1646, %v1644
        %v1649 = vld [vmem:[#allocation4] sm:$0xff]
        %v1650 = vld [vmem:[#allocation4 + $0x8] sm:$0xff]
        %v1651 = vld [vmem:[#allocation4 + $0x10] sm:$0xff]
        %v1652 = vld [vmem:[#allocation4 + $0x18] sm:$0xff]
        %v1653 = vld [vmem:[#allocation4 + $0x20] sm:$0xff]
        %v1654 = vld [vmem:[#allocation4 + $0x28] sm:$0xff]
        %v1655 = vld [vmem:[#allocation4 + $0x30] sm:$0xff]
        %v1656 = vld [vmem:[#allocation4 + $0x38] sm:$0xff]
        %v1657 = vld [vmem:[#allocation4 + $0x40] sm:$0xff]
        %v1658 = vld [vmem:[#allocation4 + $0x48] sm:$0xff]
        %v1659 = vld [vmem:[#allocation4 + $0x50] sm:$0xff]
        %v1660 = vld [vmem:[#allocation4 + $0x58] sm:$0xff]
        %v1661 = vld [vmem:[#allocation4 + $0x60] sm:$0xff]
        %v1662 = vld [vmem:[#allocation4 + $0x68] sm:$0xff]
        %v1663 = vld [vmem:[#allocation4 + $0x70] sm:$0xff]
        %v1664 = vld [vmem:[#allocation4 + $0x78] sm:$0xff]
        %v1665 = vld [vmem:[#allocation4 + $0x80] sm:$0xff]
        %v1666 = vld [vmem:[#allocation4 + $0x88] sm:$0xff]
        %v1667 = vld [vmem:[#allocation4 + $0x90] sm:$0xff]
        %v1668 = vld [vmem:[#allocation4 + $0x98] sm:$0xff]
        %v1669 = vld [vmem:[#allocation4 + $0xa0] sm:$0xff]
        %v1670 = vld [vmem:[#allocation4 + $0xa8] sm:$0xff]
        %v1671 = vld [vmem:[#allocation4 + $0xb0] sm:$0xff]
        %v1672 = vld [vmem:[#allocation4 + $0xb8] sm:$0xff]
        %v1673 = vld [vmem:[#allocation4 + $0xc0] sm:$0xff]
        %v1674 = vld [vmem:[#allocation4 + $0xc8] sm:$0xff]
        %v1675 = vld [vmem:[#allocation4 + $0xd0] sm:$0xff]
        %v1676 = vld [vmem:[#allocation4 + $0xd8] sm:$0xff]
        %v1677 = vld [vmem:[#allocation4 + $0xe0] sm:$0xff]
        %v1678 = vld [vmem:[#allocation4 + $0xe8] sm:$0xff]
        %v1679 = vld [vmem:[#allocation4 + $0xf0] sm:$0xff]
        %v1680 = vld [vmem:[#allocation4 + $0xf8] sm:$0xff]
        %v1681 = vld [vmem:[%s8] sm:$0x3]
        %v1683 = vperm.slane %v1681, 0
        %v1684 = vperm.slane %v1681, 1
        %v1719 = vunpack.c.l.b16 %v1649
        %v1720 = vunpack.c.h.b16 %v1649
        %v1721 = vunpack.c.l.b16 %v1650
        %v1722 = vunpack.c.h.b16 %v1650
        %v1723 = vunpack.c.l.b16 %v1651
        %v1724 = vunpack.c.h.b16 %v1651
        %v1725 = vunpack.c.l.b16 %v1652
        %v1726 = vunpack.c.h.b16 %v1652
        %v1727 = vunpack.c.l.b16 %v1653
        %v1728 = vunpack.c.h.b16 %v1653
        %v1729 = vunpack.c.l.b16 %v1654
        %v1730 = vunpack.c.h.b16 %v1654
        %v1731 = vunpack.c.l.b16 %v1655
        %v1732 = vunpack.c.h.b16 %v1655
        %v1733 = vunpack.c.l.b16 %v1656
        %v1734 = vunpack.c.h.b16 %v1656
        %v1735 = vunpack.c.l.b16 %v1657
        %v1736 = vunpack.c.h.b16 %v1657
        %v1737 = vunpack.c.l.b16 %v1658
        %v1738 = vunpack.c.h.b16 %v1658
        %v1739 = vunpack.c.l.b16 %v1659
        %v1740 = vunpack.c.h.b16 %v1659
        %v1741 = vunpack.c.l.b16 %v1660
        %v1742 = vunpack.c.h.b16 %v1660
        %v1743 = vunpack.c.l.b16 %v1661
        %v1744 = vunpack.c.h.b16 %v1661
        %v1745 = vunpack.c.l.b16 %v1662
        %v1746 = vunpack.c.h.b16 %v1662
        %v1747 = vunpack.c.l.b16 %v1663
        %v1748 = vunpack.c.h.b16 %v1663
        %v1749 = vunpack.c.l.b16 %v1664
        %v1750 = vunpack.c.h.b16 %v1664
        %v1751 = vunpack.c.l.b16 %v1665
        %v1752 = vunpack.c.h.b16 %v1665
        %v1753 = vunpack.c.l.b16 %v1666
        %v1754 = vunpack.c.h.b16 %v1666
        %v1755 = vunpack.c.l.b16 %v1667
        %v1756 = vunpack.c.h.b16 %v1667
        %v1757 = vunpack.c.l.b16 %v1668
        %v1758 = vunpack.c.h.b16 %v1668
        %v1759 = vunpack.c.l.b16 %v1669
        %v1760 = vunpack.c.h.b16 %v1669
        %v1761 = vunpack.c.l.b16 %v1670
        %v1762 = vunpack.c.h.b16 %v1670
        %v1763 = vunpack.c.l.b16 %v1671
        %v1764 = vunpack.c.h.b16 %v1671
        %v1765 = vunpack.c.l.b16 %v1672
        %v1766 = vunpack.c.h.b16 %v1672
        %v1767 = vunpack.c.l.b16 %v1673
        %v1768 = vunpack.c.h.b16 %v1673
        %v1769 = vunpack.c.l.b16 %v1674
        %v1770 = vunpack.c.h.b16 %v1674
        %v1771 = vunpack.c.l.b16 %v1675
        %v1772 = vunpack.c.h.b16 %v1675
        %v1773 = vunpack.c.l.b16 %v1676
        %v1774 = vunpack.c.h.b16 %v1676
        %v1775 = vunpack.c.l.b16 %v1677
        %v1776 = vunpack.c.h.b16 %v1677
        %v1777 = vunpack.c.l.b16 %v1678
        %v1778 = vunpack.c.h.b16 %v1678
        %v1779 = vunpack.c.l.b16 %v1679
        %v1780 = vunpack.c.h.b16 %v1679
        %v1781 = vunpack.c.l.b16 %v1680
        %v1782 = vunpack.c.h.b16 %v1680
        %v1783 = vpack.c.b16 %v1721, %v1719
        %v1784 = vpack.c.b16 %v1722, %v1720
        %v1785 = vpack.c.b16 %v1725, %v1723
        %v1786 = vpack.c.b16 %v1726, %v1724
        %v1787 = vpack.c.b16 %v1729, %v1727
        %v1788 = vpack.c.b16 %v1730, %v1728
        %v1789 = vpack.c.b16 %v1733, %v1731
        %v1790 = vpack.c.b16 %v1734, %v1732
        %v1791 = vpack.c.b16 %v1737, %v1735
        %v1792 = vpack.c.b16 %v1738, %v1736
        %v1793 = vpack.c.b16 %v1741, %v1739
        %v1794 = vpack.c.b16 %v1742, %v1740
        %v1795 = vpack.c.b16 %v1745, %v1743
        %v1796 = vpack.c.b16 %v1746, %v1744
        %v1797 = vpack.c.b16 %v1749, %v1747
        %v1798 = vpack.c.b16 %v1750, %v1748
        %v1799 = vpack.c.b16 %v1753, %v1751
        %v1800 = vpack.c.b16 %v1754, %v1752
        %v1801 = vpack.c.b16 %v1757, %v1755
        %v1802 = vpack.c.b16 %v1758, %v1756
        %v1803 = vpack.c.b16 %v1761, %v1759
        %v1804 = vpack.c.b16 %v1762, %v1760
        %v1805 = vpack.c.b16 %v1765, %v1763
        %v1806 = vpack.c.b16 %v1766, %v1764
        %v1807 = vpack.c.b16 %v1769, %v1767
        %v1808 = vpack.c.b16 %v1770, %v1768
        %v1809 = vpack.c.b16 %v1773, %v1771
        %v1810 = vpack.c.b16 %v1774, %v1772
        %v1811 = vpack.c.b16 %v1777, %v1775
        %v1812 = vpack.c.b16 %v1778, %v1776
        %v1813 = vpack.c.b16 %v1781, %v1779
        %v1814 = vpack.c.b16 %v1782, %v1780
        %1847 = vmatpush.bf16.msra.mxu0 %v1797
        %1848 = vmatpush.bf16.msra.mxu0 %v1795
        %1849 = vmatpush.bf16.msra.mxu0 %v1793
        %1850 = vmatpush.bf16.msra.mxu0 %v1791
        %1851 = vmatpush.bf16.msra.mxu0 %v1789
        %1852 = vmatpush.bf16.msra.mxu0 %v1787
        %1853 = vmatpush.bf16.msra.mxu0 %v1785
        %1854 = vmatpush.bf16.msra.mxu0 %v1783
        %1855 = vmatmul.bf16.gmra.mxu0 %v1647
        %v1856 = vpop.f32.mrf.mxu0
        %v1857 = vadd.f32 %v1683, %v1856
        %v1858 = vpop.f32.mrf.mxu0
        %v1859 = vadd.f32 %v1683, %v1858
        %1860 = vdwg.mxu0
        %1861 = vmatpush.bf16.msra.mxu0 %v1813
        %1862 = vmatpush.bf16.msra.mxu0 %v1811
        %1863 = vmatpush.bf16.msra.mxu0 %v1809
        %1864 = vmatpush.bf16.msra.mxu0 %v1807
        %1865 = vmatpush.bf16.msra.mxu0 %v1805
        %1866 = vmatpush.bf16.msra.mxu0 %v1803
        %1867 = vmatpush.bf16.msra.mxu0 %v1801
        %1868 = vmatpush.bf16.msra.mxu0 %v1799
        %1869 = vmatmul.bf16.gmra.mxu0 %v1648
        %v1870 = vpop.f32.mrf.mxu0
        %v1871 = vadd.f32 %v1857, %v1870
        %v1872 = vpop.f32.mrf.mxu0
        %v1873 = vadd.f32 %v1859, %v1872
        %1874 = vdwg.mxu0
        %1875 = vmatpush.bf16.msra.mxu0 %v1798
        %1876 = vmatpush.bf16.msra.mxu0 %v1796
        %1877 = vmatpush.bf16.msra.mxu0 %v1794
        %1878 = vmatpush.bf16.msra.mxu0 %v1792
        %1879 = vmatpush.bf16.msra.mxu0 %v1790
        %1880 = vmatpush.bf16.msra.mxu0 %v1788
        %1881 = vmatpush.bf16.msra.mxu0 %v1786
        %1882 = vmatpush.bf16.msra.mxu0 %v1784
        %1883 = vmatmul.bf16.gmra.mxu0 %v1647
        %v1884 = vpop.f32.mrf.mxu0
        %v1885 = vadd.f32 %v1684, %v1884
        %v1886 = vpop.f32.mrf.mxu0
        %v1887 = vadd.f32 %v1684, %v1886
        %1888 = vdwg.mxu0
        %1889 = vmatpush.bf16.msra.mxu0 %v1814
        %1890 = vmatpush.bf16.msra.mxu0 %v1812
        %1891 = vmatpush.bf16.msra.mxu0 %v1810
        %1892 = vmatpush.bf16.msra.mxu0 %v1808
        %1893 = vmatpush.bf16.msra.mxu0 %v1806
        %1894 = vmatpush.bf16.msra.mxu0 %v1804
        %1895 = vmatpush.bf16.msra.mxu0 %v1802
        %1896 = vmatpush.bf16.msra.mxu0 %v1800
        %1897 = vmatmul.bf16.gmra.mxu0 %v1648
        %v1898 = vpop.f32.mrf.mxu0
        %v1899 = vadd.f32 %v1885, %v1898
        %v1900 = vpop.f32.mrf.mxu0
        %v1901 = vadd.f32 %v1887, %v1900
        %1902 = vdwg.mxu0
        %v1903 = vtanh.pop %v1871
        %v1904 = vtanh.pop %v1899
        %v1905 = vtanh.pop %v1873
        %v1906 = vtanh.pop %v1901
        %v1907 = vpack.c.bf16 %v1905, %v1903
        %v1908 = vpack.c.bf16 %v1906, %v1904
        %v1909 = vld [vmem:[#allocation5] sm:$0xf]
        %v1910 = vld [vmem:[#allocation5 + $0x4] sm:$0xf]
        %v1911 = vld [vmem:[#allocation5 + $0x8] sm:$0xf]
        %v1912 = vld [vmem:[#allocation5 + $0xc] sm:$0xf]
        %v1913 = vld [vmem:[#allocation5 + $0x10] sm:$0xf]
        %v1914 = vld [vmem:[#allocation5 + $0x14] sm:$0xf]
        %v1915 = vld [vmem:[#allocation5 + $0x18] sm:$0xf]
        %v1916 = vld [vmem:[#allocation5 + $0x1c] sm:$0xf]
        %v1917 = vld [vmem:[#allocation5 + $0x20] sm:$0xf]
        %v1918 = vld [vmem:[#allocation5 + $0x24] sm:$0xf]
        %v1919 = vld [vmem:[#allocation5 + $0x28] sm:$0xf]
        %v1920 = vld [vmem:[#allocation5 + $0x2c] sm:$0xf]
        %v1921 = vld [vmem:[#allocation5 + $0x30] sm:$0xf]
        %v1922 = vld [vmem:[#allocation5 + $0x34] sm:$0xf]
        %v1923 = vld [vmem:[#allocation5 + $0x38] sm:$0xf]
        %v1924 = vld [vmem:[#allocation5 + $0x3c] sm:$0xf]
        %v1925 = vld [vmem:[#allocation5 + $0x40] sm:$0xf]
        %v1926 = vld [vmem:[#allocation5 + $0x44] sm:$0xf]
        %v1927 = vld [vmem:[#allocation5 + $0x48] sm:$0xf]
        %v1928 = vld [vmem:[#allocation5 + $0x4c] sm:$0xf]
        %v1929 = vld [vmem:[#allocation5 + $0x50] sm:$0xf]
        %v1930 = vld [vmem:[#allocation5 + $0x54] sm:$0xf]
        %v1931 = vld [vmem:[#allocation5 + $0x58] sm:$0xf]
        %v1932 = vld [vmem:[#allocation5 + $0x5c] sm:$0xf]
        %v1933 = vld [vmem:[#allocation5 + $0x60] sm:$0xf]
        %v1934 = vld [vmem:[#allocation5 + $0x64] sm:$0xf]
        %v1935 = vld [vmem:[#allocation5 + $0x68] sm:$0xf]
        %v1936 = vld [vmem:[#allocation5 + $0x6c] sm:$0xf]
        %v1937 = vld [vmem:[#allocation5 + $0x70] sm:$0xf]
        %v1938 = vld [vmem:[#allocation5 + $0x74] sm:$0xf]
        %v1939 = vld [vmem:[#allocation5 + $0x78] sm:$0xf]
        %v1940 = vld [vmem:[#allocation5 + $0x7c] sm:$0xf]
        %v1941 = vld [vmem:[%s9] sm:$0x1]
        %v1943 = vperm.slane %v1941, 0
        %v1977 = vunpack.c.l.b16 %v1909
        %v1978 = vunpack.c.l.b16 %v1910
        %v1979 = vunpack.c.l.b16 %v1911
        %v1980 = vunpack.c.l.b16 %v1912
        %v1981 = vunpack.c.l.b16 %v1913
        %v1982 = vunpack.c.l.b16 %v1914
        %v1983 = vunpack.c.l.b16 %v1915
        %v1984 = vunpack.c.l.b16 %v1916
        %v1985 = vunpack.c.l.b16 %v1917
        %v1986 = vunpack.c.l.b16 %v1918
        %v1987 = vunpack.c.l.b16 %v1919
        %v1988 = vunpack.c.l.b16 %v1920
        %v1989 = vunpack.c.l.b16 %v1921
        %v1990 = vunpack.c.l.b16 %v1922
        %v1991 = vunpack.c.l.b16 %v1923
        %v1992 = vunpack.c.l.b16 %v1924
        %v1993 = vunpack.c.l.b16 %v1925
        %v1994 = vunpack.c.l.b16 %v1926
        %v1995 = vunpack.c.l.b16 %v1927
        %v1996 = vunpack.c.l.b16 %v1928
        %v1997 = vunpack.c.l.b16 %v1929
        %v1998 = vunpack.c.l.b16 %v1930
        %v1999 = vunpack.c.l.b16 %v1931
        %v2000 = vunpack.c.l.b16 %v1932
        %v2001 = vunpack.c.l.b16 %v1933
        %v2002 = vunpack.c.l.b16 %v1934
        %v2003 = vunpack.c.l.b16 %v1935
        %v2004 = vunpack.c.l.b16 %v1936
        %v2005 = vunpack.c.l.b16 %v1937
        %v2006 = vunpack.c.l.b16 %v1938
        %v2007 = vunpack.c.l.b16 %v1939
        %v2008 = vunpack.c.l.b16 %v1940
        %v2009 = vpack.c.b16 %v1978, %v1977
        %v2010 = vpack.c.b16 %v1980, %v1979
        %v2011 = vpack.c.b16 %v1982, %v1981
        %v2012 = vpack.c.b16 %v1984, %v1983
        %v2013 = vpack.c.b16 %v1986, %v1985
        %v2014 = vpack.c.b16 %v1988, %v1987
        %v2015 = vpack.c.b16 %v1990, %v1989
        %v2016 = vpack.c.b16 %v1992, %v1991
        %v2017 = vpack.c.b16 %v1994, %v1993
        %v2018 = vpack.c.b16 %v1996, %v1995
        %v2019 = vpack.c.b16 %v1998, %v1997
        %v2020 = vpack.c.b16 %v2000, %v1999
        %v2021 = vpack.c.b16 %v2002, %v2001
        %v2022 = vpack.c.b16 %v2004, %v2003
        %v2023 = vpack.c.b16 %v2006, %v2005
        %v2024 = vpack.c.b16 %v2008, %v2007
        %2041 = vmatpush.bf16.msra.mxu0 %v2016
        %2042 = vmatpush.bf16.msra.mxu0 %v2015
        %2043 = vmatpush.bf16.msra.mxu0 %v2014
        %2044 = vmatpush.bf16.msra.mxu0 %v2013
        %2045 = vmatpush.bf16.msra.mxu0 %v2012
        %2046 = vmatpush.bf16.msra.mxu0 %v2011
        %2047 = vmatpush.bf16.msra.mxu0 %v2010
        %2048 = vmatpush.bf16.msra.mxu0 %v2009
        %2049 = vmatmul.bf16.gmra.mxu0 %v1907
        %v2050 = vpop.f32.mrf.mxu0
        %v2051 = vadd.f32 %v1943, %v2050
        %v2052 = vpop.f32.mrf.mxu0
        %v2053 = vadd.f32 %v1943, %v2052
        %2054 = vdwg.mxu0
        %2055 = vmatpush.bf16.msra.mxu0 %v2024
        %2056 = vmatpush.bf16.msra.mxu0 %v2023
        %2057 = vmatpush.bf16.msra.mxu0 %v2022
        %2058 = vmatpush.bf16.msra.mxu0 %v2021
        %2059 = vmatpush.bf16.msra.mxu0 %v2020
        %2060 = vmatpush.bf16.msra.mxu0 %v2019
        %2061 = vmatpush.bf16.msra.mxu0 %v2018
        %2062 = vmatpush.bf16.msra.mxu0 %v2017
        %2063 = vmatmul.bf16.gmra.mxu0 %v1908
        %v2064 = vpop.f32.mrf.mxu0
        %v2065 = vadd.f32 %v2051, %v2064
        %v2066 = vpop.f32.mrf.mxu0
        %v2067 = vadd.f32 %v2053, %v2066
        %2068 = vdwg.mxu0
        %s2069 = sld [smem:[#allocation8 + %s1499]]
        %v2070 = vstv %s2069
        %v2071 = vmul.f32 %v2070, %v2065
        %v2072 = vmul.f32 %v2070, %v2067
        %v2073 = vadd.f32 %v1505, %v2071
        %v2074 = vadd.f32 %v1506, %v2072
        %2075 = vst [vmem:[#allocation2] sm:$0xff] %v2073
        %2076 = vst [vmem:[#allocation2 + $0x8] sm:$0xff] %v2074
        %s2077 = sadd.s32 %s344, 3
        %v2078 = vld [vmem:[#allocation2] sm:$0xff]
        %v2079 = vld [vmem:[#allocation2 + $0x8] sm:$0xff]
        %s2080 = scalar_lea.vmem %s264, 48
        %2081 = vst [vmem:[%s2080] sm:$0xff] %v2078
        %2082 = vst [vmem:[%s2080 + $0x8] sm:$0xff] %v2079
        %v2083 = vld [vmem:[#allocation2] sm:$0xff]
        %v2084 = vld [vmem:[#allocation2 + $0x8] sm:$0xff]
        %v2085 = vpack.c.bf16 %v2084, %v2083
        %s2086 = sld [smem:[#allocation6 + %s2077]]
        %v2087 = vld [vmem:[%s6] sm:$0x3]
        %v2088 = vstv %s2086
        %v2089 = vmul.f32 %v2088, %v2087
        %v2090 = vld [vmem:[%s7] sm:$0x3]
        %v2091 = vadd.f32 %v2089, %v2090
        %v2092 = vld [vmem:[#allocation3] sm:$0xff]
        %v2093 = vld [vmem:[#allocation3 + $0x8] sm:$0xff]
        %v2094 = vld [vmem:[#allocation3 + $0x10] sm:$0xff]
        %v2095 = vld [vmem:[#allocation3 + $0x18] sm:$0xff]
        %v2096 = vld [vmem:[#allocation3 + $0x20] sm:$0xff]
        %v2097 = vld [vmem:[#allocation3 + $0x28] sm:$0xff]
        %v2098 = vld [vmem:[#allocation3 + $0x30] sm:$0xff]
        %v2099 = vld [vmem:[#allocation3 + $0x38] sm:$0xff]
        %v2100 = vld [vmem:[#allocation3 + $0x40] sm:$0xff]
        %v2101 = vld [vmem:[#allocation3 + $0x48] sm:$0xff]
        %v2102 = vld [vmem:[#allocation3 + $0x50] sm:$0xff]
        %v2103 = vld [vmem:[#allocation3 + $0x58] sm:$0xff]
        %v2104 = vld [vmem:[#allocation3 + $0x60] sm:$0xff]
        %v2105 = vld [vmem:[#allocation3 + $0x68] sm:$0xff]
        %v2106 = vld [vmem:[#allocation3 + $0x70] sm:$0xff]
        %v2107 = vld [vmem:[#allocation3 + $0x78] sm:$0xff]
        %v2109 = vperm.slane %v2091, 0
        %v2110 = vperm.slane %v2091, 1
        %v2129 = vunpack.c.l.b16 %v2092
        %v2130 = vunpack.c.h.b16 %v2092
        %v2131 = vunpack.c.l.b16 %v2093
        %v2132 = vunpack.c.h.b16 %v2093
        %v2133 = vunpack.c.l.b16 %v2094
        %v2134 = vunpack.c.h.b16 %v2094
        %v2135 = vunpack.c.l.b16 %v2095
        %v2136 = vunpack.c.h.b16 %v2095
        %v2137 = vunpack.c.l.b16 %v2096
        %v2138 = vunpack.c.h.b16 %v2096
        %v2139 = vunpack.c.l.b16 %v2097
        %v2140 = vunpack.c.h.b16 %v2097
        %v2141 = vunpack.c.l.b16 %v2098
        %v2142 = vunpack.c.h.b16 %v2098
        %v2143 = vunpack.c.l.b16 %v2099
        %v2144 = vunpack.c.h.b16 %v2099
        %v2145 = vunpack.c.l.b16 %v2100
        %v2146 = vunpack.c.h.b16 %v2100
        %v2147 = vunpack.c.l.b16 %v2101
        %v2148 = vunpack.c.h.b16 %v2101
        %v2149 = vunpack.c.l.b16 %v2102
        %v2150 = vunpack.c.h.b16 %v2102
        %v2151 = vunpack.c.l.b16 %v2103
        %v2152 = vunpack.c.h.b16 %v2103
        %v2153 = vunpack.c.l.b16 %v2104
        %v2154 = vunpack.c.h.b16 %v2104
        %v2155 = vunpack.c.l.b16 %v2105
        %v2156 = vunpack.c.h.b16 %v2105
        %v2157 = vunpack.c.l.b16 %v2106
        %v2158 = vunpack.c.h.b16 %v2106
        %v2159 = vunpack.c.l.b16 %v2107
        %v2160 = vunpack.c.h.b16 %v2107
        %v2161 = vpack.c.b16 %v2131, %v2129
        %v2162 = vpack.c.b16 %v2132, %v2130
        %v2163 = vpack.c.b16 %v2135, %v2133
        %v2164 = vpack.c.b16 %v2136, %v2134
        %v2165 = vpack.c.b16 %v2139, %v2137
        %v2166 = vpack.c.b16 %v2140, %v2138
        %v2167 = vpack.c.b16 %v2143, %v2141
        %v2168 = vpack.c.b16 %v2144, %v2142
        %v2169 = vpack.c.b16 %v2147, %v2145
        %v2170 = vpack.c.b16 %v2148, %v2146
        %v2171 = vpack.c.b16 %v2151, %v2149
        %v2172 = vpack.c.b16 %v2152, %v2150
        %v2173 = vpack.c.b16 %v2155, %v2153
        %v2174 = vpack.c.b16 %v2156, %v2154
        %v2175 = vpack.c.b16 %v2159, %v2157
        %v2176 = vpack.c.b16 %v2160, %v2158
        %2193 = vmatpush.bf16.msra.mxu0 %v2175
        %2194 = vmatpush.bf16.msra.mxu0 %v2173
        %2195 = vmatpush.bf16.msra.mxu0 %v2171
        %2196 = vmatpush.bf16.msra.mxu0 %v2169
        %2197 = vmatpush.bf16.msra.mxu0 %v2167
        %2198 = vmatpush.bf16.msra.mxu0 %v2165
        %2199 = vmatpush.bf16.msra.mxu0 %v2163
        %2200 = vmatpush.bf16.msra.mxu0 %v2161
        %2201 = vmatmul.bf16.gmra.mxu0 %v2085
        %v2202 = vpop.f32.mrf.mxu0
        %v2203 = vadd.f32 %v2109, %v2202
        %v2204 = vpop.f32.mrf.mxu0
        %v2205 = vadd.f32 %v2109, %v2204
        %2206 = vdwg.mxu0
        %2207 = vmatpush.bf16.msra.mxu0 %v2176
        %2208 = vmatpush.bf16.msra.mxu0 %v2174
        %2209 = vmatpush.bf16.msra.mxu0 %v2172
        %2210 = vmatpush.bf16.msra.mxu0 %v2170
        %2211 = vmatpush.bf16.msra.mxu0 %v2168
        %2212 = vmatpush.bf16.msra.mxu0 %v2166
        %2213 = vmatpush.bf16.msra.mxu0 %v2164
        %2214 = vmatpush.bf16.msra.mxu0 %v2162
        %2215 = vmatmul.bf16.gmra.mxu0 %v2085
        %v2216 = vpop.f32.mrf.mxu0
        %v2217 = vadd.f32 %v2110, %v2216
        %v2218 = vpop.f32.mrf.mxu0
        %v2219 = vadd.f32 %v2110, %v2218
        %2220 = vdwg.mxu0
        %v2221 = vtanh.pop %v2203
        %v2222 = vtanh.pop %v2217
        %v2223 = vtanh.pop %v2205
        %v2224 = vtanh.pop %v2219
        %v2225 = vpack.c.bf16 %v2223, %v2221
        %v2226 = vpack.c.bf16 %v2224, %v2222
        %v2227 = vld [vmem:[#allocation4] sm:$0xff]
        %v2228 = vld [vmem:[#allocation4 + $0x8] sm:$0xff]
        %v2229 = vld [vmem:[#allocation4 + $0x10] sm:$0xff]
        %v2230 = vld [vmem:[#allocation4 + $0x18] sm:$0xff]
        %v2231 = vld [vmem:[#allocation4 + $0x20] sm:$0xff]
        %v2232 = vld [vmem:[#allocation4 + $0x28] sm:$0xff]
        %v2233 = vld [vmem:[#allocation4 + $0x30] sm:$0xff]
        %v2234 = vld [vmem:[#allocation4 + $0x38] sm:$0xff]
        %v2235 = vld [vmem:[#allocation4 + $0x40] sm:$0xff]
        %v2236 = vld [vmem:[#allocation4 + $0x48] sm:$0xff]
        %v2237 = vld [vmem:[#allocation4 + $0x50] sm:$0xff]
        %v2238 = vld [vmem:[#allocation4 + $0x58] sm:$0xff]
        %v2239 = vld [vmem:[#allocation4 + $0x60] sm:$0xff]
        %v2240 = vld [vmem:[#allocation4 + $0x68] sm:$0xff]
        %v2241 = vld [vmem:[#allocation4 + $0x70] sm:$0xff]
        %v2242 = vld [vmem:[#allocation4 + $0x78] sm:$0xff]
        %v2243 = vld [vmem:[#allocation4 + $0x80] sm:$0xff]
        %v2244 = vld [vmem:[#allocation4 + $0x88] sm:$0xff]
        %v2245 = vld [vmem:[#allocation4 + $0x90] sm:$0xff]
        %v2246 = vld [vmem:[#allocation4 + $0x98] sm:$0xff]
        %v2247 = vld [vmem:[#allocation4 + $0xa0] sm:$0xff]
        %v2248 = vld [vmem:[#allocation4 + $0xa8] sm:$0xff]
        %v2249 = vld [vmem:[#allocation4 + $0xb0] sm:$0xff]
        %v2250 = vld [vmem:[#allocation4 + $0xb8] sm:$0xff]
        %v2251 = vld [vmem:[#allocation4 + $0xc0] sm:$0xff]
        %v2252 = vld [vmem:[#allocation4 + $0xc8] sm:$0xff]
        %v2253 = vld [vmem:[#allocation4 + $0xd0] sm:$0xff]
        %v2254 = vld [vmem:[#allocation4 + $0xd8] sm:$0xff]
        %v2255 = vld [vmem:[#allocation4 + $0xe0] sm:$0xff]
        %v2256 = vld [vmem:[#allocation4 + $0xe8] sm:$0xff]
        %v2257 = vld [vmem:[#allocation4 + $0xf0] sm:$0xff]
        %v2258 = vld [vmem:[#allocation4 + $0xf8] sm:$0xff]
        %v2259 = vld [vmem:[%s8] sm:$0x3]
        %v2261 = vperm.slane %v2259, 0
        %v2262 = vperm.slane %v2259, 1
        %v2297 = vunpack.c.l.b16 %v2227
        %v2298 = vunpack.c.h.b16 %v2227
        %v2299 = vunpack.c.l.b16 %v2228
        %v2300 = vunpack.c.h.b16 %v2228
        %v2301 = vunpack.c.l.b16 %v2229
        %v2302 = vunpack.c.h.b16 %v2229
        %v2303 = vunpack.c.l.b16 %v2230
        %v2304 = vunpack.c.h.b16 %v2230
        %v2305 = vunpack.c.l.b16 %v2231
        %v2306 = vunpack.c.h.b16 %v2231
        %v2307 = vunpack.c.l.b16 %v2232
        %v2308 = vunpack.c.h.b16 %v2232
        %v2309 = vunpack.c.l.b16 %v2233
        %v2310 = vunpack.c.h.b16 %v2233
        %v2311 = vunpack.c.l.b16 %v2234
        %v2312 = vunpack.c.h.b16 %v2234
        %v2313 = vunpack.c.l.b16 %v2235
        %v2314 = vunpack.c.h.b16 %v2235
        %v2315 = vunpack.c.l.b16 %v2236
        %v2316 = vunpack.c.h.b16 %v2236
        %v2317 = vunpack.c.l.b16 %v2237
        %v2318 = vunpack.c.h.b16 %v2237
        %v2319 = vunpack.c.l.b16 %v2238
        %v2320 = vunpack.c.h.b16 %v2238
        %v2321 = vunpack.c.l.b16 %v2239
        %v2322 = vunpack.c.h.b16 %v2239
        %v2323 = vunpack.c.l.b16 %v2240
        %v2324 = vunpack.c.h.b16 %v2240
        %v2325 = vunpack.c.l.b16 %v2241
        %v2326 = vunpack.c.h.b16 %v2241
        %v2327 = vunpack.c.l.b16 %v2242
        %v2328 = vunpack.c.h.b16 %v2242
        %v2329 = vunpack.c.l.b16 %v2243
        %v2330 = vunpack.c.h.b16 %v2243
        %v2331 = vunpack.c.l.b16 %v2244
        %v2332 = vunpack.c.h.b16 %v2244
        %v2333 = vunpack.c.l.b16 %v2245
        %v2334 = vunpack.c.h.b16 %v2245
        %v2335 = vunpack.c.l.b16 %v2246
        %v2336 = vunpack.c.h.b16 %v2246
        %v2337 = vunpack.c.l.b16 %v2247
        %v2338 = vunpack.c.h.b16 %v2247
        %v2339 = vunpack.c.l.b16 %v2248
        %v2340 = vunpack.c.h.b16 %v2248
        %v2341 = vunpack.c.l.b16 %v2249
        %v2342 = vunpack.c.h.b16 %v2249
        %v2343 = vunpack.c.l.b16 %v2250
        %v2344 = vunpack.c.h.b16 %v2250
        %v2345 = vunpack.c.l.b16 %v2251
        %v2346 = vunpack.c.h.b16 %v2251
        %v2347 = vunpack.c.l.b16 %v2252
        %v2348 = vunpack.c.h.b16 %v2252
        %v2349 = vunpack.c.l.b16 %v2253
        %v2350 = vunpack.c.h.b16 %v2253
        %v2351 = vunpack.c.l.b16 %v2254
        %v2352 = vunpack.c.h.b16 %v2254
        %v2353 = vunpack.c.l.b16 %v2255
        %v2354 = vunpack.c.h.b16 %v2255
        %v2355 = vunpack.c.l.b16 %v2256
        %v2356 = vunpack.c.h.b16 %v2256
        %v2357 = vunpack.c.l.b16 %v2257
        %v2358 = vunpack.c.h.b16 %v2257
        %v2359 = vunpack.c.l.b16 %v2258
        %v2360 = vunpack.c.h.b16 %v2258
        %v2361 = vpack.c.b16 %v2299, %v2297
        %v2362 = vpack.c.b16 %v2300, %v2298
        %v2363 = vpack.c.b16 %v2303, %v2301
        %v2364 = vpack.c.b16 %v2304, %v2302
        %v2365 = vpack.c.b16 %v2307, %v2305
        %v2366 = vpack.c.b16 %v2308, %v2306
        %v2367 = vpack.c.b16 %v2311, %v2309
        %v2368 = vpack.c.b16 %v2312, %v2310
        %v2369 = vpack.c.b16 %v2315, %v2313
        %v2370 = vpack.c.b16 %v2316, %v2314
        %v2371 = vpack.c.b16 %v2319, %v2317
        %v2372 = vpack.c.b16 %v2320, %v2318
        %v2373 = vpack.c.b16 %v2323, %v2321
        %v2374 = vpack.c.b16 %v2324, %v2322
        %v2375 = vpack.c.b16 %v2327, %v2325
        %v2376 = vpack.c.b16 %v2328, %v2326
        %v2377 = vpack.c.b16 %v2331, %v2329
        %v2378 = vpack.c.b16 %v2332, %v2330
        %v2379 = vpack.c.b16 %v2335, %v2333
        %v2380 = vpack.c.b16 %v2336, %v2334
        %v2381 = vpack.c.b16 %v2339, %v2337
        %v2382 = vpack.c.b16 %v2340, %v2338
        %v2383 = vpack.c.b16 %v2343, %v2341
        %v2384 = vpack.c.b16 %v2344, %v2342
        %v2385 = vpack.c.b16 %v2347, %v2345
        %v2386 = vpack.c.b16 %v2348, %v2346
        %v2387 = vpack.c.b16 %v2351, %v2349
        %v2388 = vpack.c.b16 %v2352, %v2350
        %v2389 = vpack.c.b16 %v2355, %v2353
        %v2390 = vpack.c.b16 %v2356, %v2354
        %v2391 = vpack.c.b16 %v2359, %v2357
        %v2392 = vpack.c.b16 %v2360, %v2358
        %2425 = vmatpush.bf16.msra.mxu0 %v2375
        %2426 = vmatpush.bf16.msra.mxu0 %v2373
        %2427 = vmatpush.bf16.msra.mxu0 %v2371
        %2428 = vmatpush.bf16.msra.mxu0 %v2369
        %2429 = vmatpush.bf16.msra.mxu0 %v2367
        %2430 = vmatpush.bf16.msra.mxu0 %v2365
        %2431 = vmatpush.bf16.msra.mxu0 %v2363
        %2432 = vmatpush.bf16.msra.mxu0 %v2361
        %2433 = vmatmul.bf16.gmra.mxu0 %v2225
        %v2434 = vpop.f32.mrf.mxu0
        %v2435 = vadd.f32 %v2261, %v2434
        %v2436 = vpop.f32.mrf.mxu0
        %v2437 = vadd.f32 %v2261, %v2436
        %2438 = vdwg.mxu0
        %2439 = vmatpush.bf16.msra.mxu0 %v2391
        %2440 = vmatpush.bf16.msra.mxu0 %v2389
        %2441 = vmatpush.bf16.msra.mxu0 %v2387
        %2442 = vmatpush.bf16.msra.mxu0 %v2385
        %2443 = vmatpush.bf16.msra.mxu0 %v2383
        %2444 = vmatpush.bf16.msra.mxu0 %v2381
        %2445 = vmatpush.bf16.msra.mxu0 %v2379
        %2446 = vmatpush.bf16.msra.mxu0 %v2377
        %2447 = vmatmul.bf16.gmra.mxu0 %v2226
        %v2448 = vpop.f32.mrf.mxu0
        %v2449 = vadd.f32 %v2435, %v2448
        %v2450 = vpop.f32.mrf.mxu0
        %v2451 = vadd.f32 %v2437, %v2450
        %2452 = vdwg.mxu0
        %2453 = vmatpush.bf16.msra.mxu0 %v2376
        %2454 = vmatpush.bf16.msra.mxu0 %v2374
        %2455 = vmatpush.bf16.msra.mxu0 %v2372
        %2456 = vmatpush.bf16.msra.mxu0 %v2370
        %2457 = vmatpush.bf16.msra.mxu0 %v2368
        %2458 = vmatpush.bf16.msra.mxu0 %v2366
        %2459 = vmatpush.bf16.msra.mxu0 %v2364
        %2460 = vmatpush.bf16.msra.mxu0 %v2362
        %2461 = vmatmul.bf16.gmra.mxu0 %v2225
        %v2462 = vpop.f32.mrf.mxu0
        %v2463 = vadd.f32 %v2262, %v2462
        %v2464 = vpop.f32.mrf.mxu0
        %v2465 = vadd.f32 %v2262, %v2464
        %2466 = vdwg.mxu0
        %2467 = vmatpush.bf16.msra.mxu0 %v2392
        %2468 = vmatpush.bf16.msra.mxu0 %v2390
        %2469 = vmatpush.bf16.msra.mxu0 %v2388
        %2470 = vmatpush.bf16.msra.mxu0 %v2386
        %2471 = vmatpush.bf16.msra.mxu0 %v2384
        %2472 = vmatpush.bf16.msra.mxu0 %v2382
        %2473 = vmatpush.bf16.msra.mxu0 %v2380
        %2474 = vmatpush.bf16.msra.mxu0 %v2378
        %2475 = vmatmul.bf16.gmra.mxu0 %v2226
        %v2476 = vpop.f32.mrf.mxu0
        %v2477 = vadd.f32 %v2463, %v2476
        %v2478 = vpop.f32.mrf.mxu0
        %v2479 = vadd.f32 %v2465, %v2478
        %2480 = vdwg.mxu0
        %v2481 = vtanh.pop %v2449
        %v2482 = vtanh.pop %v2477
        %v2483 = vtanh.pop %v2451
        %v2484 = vtanh.pop %v2479
        %v2485 = vpack.c.bf16 %v2483, %v2481
        %v2486 = vpack.c.bf16 %v2484, %v2482
        %v2487 = vld [vmem:[#allocation5] sm:$0xf]
        %v2488 = vld [vmem:[#allocation5 + $0x4] sm:$0xf]
        %v2489 = vld [vmem:[#allocation5 + $0x8] sm:$0xf]
        %v2490 = vld [vmem:[#allocation5 + $0xc] sm:$0xf]
        %v2491 = vld [vmem:[#allocation5 + $0x10] sm:$0xf]
        %v2492 = vld [vmem:[#allocation5 + $0x14] sm:$0xf]
        %v2493 = vld [vmem:[#allocation5 + $0x18] sm:$0xf]
        %v2494 = vld [vmem:[#allocation5 + $0x1c] sm:$0xf]
        %v2495 = vld [vmem:[#allocation5 + $0x20] sm:$0xf]
        %v2496 = vld [vmem:[#allocation5 + $0x24] sm:$0xf]
        %v2497 = vld [vmem:[#allocation5 + $0x28] sm:$0xf]
        %v2498 = vld [vmem:[#allocation5 + $0x2c] sm:$0xf]
        %v2499 = vld [vmem:[#allocation5 + $0x30] sm:$0xf]
        %v2500 = vld [vmem:[#allocation5 + $0x34] sm:$0xf]
        %v2501 = vld [vmem:[#allocation5 + $0x38] sm:$0xf]
        %v2502 = vld [vmem:[#allocation5 + $0x3c] sm:$0xf]
        %v2503 = vld [vmem:[#allocation5 + $0x40] sm:$0xf]
        %v2504 = vld [vmem:[#allocation5 + $0x44] sm:$0xf]
        %v2505 = vld [vmem:[#allocation5 + $0x48] sm:$0xf]
        %v2506 = vld [vmem:[#allocation5 + $0x4c] sm:$0xf]
        %v2507 = vld [vmem:[#allocation5 + $0x50] sm:$0xf]
        %v2508 = vld [vmem:[#allocation5 + $0x54] sm:$0xf]
        %v2509 = vld [vmem:[#allocation5 + $0x58] sm:$0xf]
        %v2510 = vld [vmem:[#allocation5 + $0x5c] sm:$0xf]
        %v2511 = vld [vmem:[#allocation5 + $0x60] sm:$0xf]
        %v2512 = vld [vmem:[#allocation5 + $0x64] sm:$0xf]
        %v2513 = vld [vmem:[#allocation5 + $0x68] sm:$0xf]
        %v2514 = vld [vmem:[#allocation5 + $0x6c] sm:$0xf]
        %v2515 = vld [vmem:[#allocation5 + $0x70] sm:$0xf]
        %v2516 = vld [vmem:[#allocation5 + $0x74] sm:$0xf]
        %v2517 = vld [vmem:[#allocation5 + $0x78] sm:$0xf]
        %v2518 = vld [vmem:[#allocation5 + $0x7c] sm:$0xf]
        %v2519 = vld [vmem:[%s9] sm:$0x1]
        %v2521 = vperm.slane %v2519, 0
        %v2555 = vunpack.c.l.b16 %v2487
        %v2556 = vunpack.c.l.b16 %v2488
        %v2557 = vunpack.c.l.b16 %v2489
        %v2558 = vunpack.c.l.b16 %v2490
        %v2559 = vunpack.c.l.b16 %v2491
        %v2560 = vunpack.c.l.b16 %v2492
        %v2561 = vunpack.c.l.b16 %v2493
        %v2562 = vunpack.c.l.b16 %v2494
        %v2563 = vunpack.c.l.b16 %v2495
        %v2564 = vunpack.c.l.b16 %v2496
        %v2565 = vunpack.c.l.b16 %v2497
        %v2566 = vunpack.c.l.b16 %v2498
        %v2567 = vunpack.c.l.b16 %v2499
        %v2568 = vunpack.c.l.b16 %v2500
        %v2569 = vunpack.c.l.b16 %v2501
        %v2570 = vunpack.c.l.b16 %v2502
        %v2571 = vunpack.c.l.b16 %v2503
        %v2572 = vunpack.c.l.b16 %v2504
        %v2573 = vunpack.c.l.b16 %v2505
        %v2574 = vunpack.c.l.b16 %v2506
        %v2575 = vunpack.c.l.b16 %v2507
        %v2576 = vunpack.c.l.b16 %v2508
        %v2577 = vunpack.c.l.b16 %v2509
        %v2578 = vunpack.c.l.b16 %v2510
        %v2579 = vunpack.c.l.b16 %v2511
        %v2580 = vunpack.c.l.b16 %v2512
        %v2581 = vunpack.c.l.b16 %v2513
        %v2582 = vunpack.c.l.b16 %v2514
        %v2583 = vunpack.c.l.b16 %v2515
        %v2584 = vunpack.c.l.b16 %v2516
        %v2585 = vunpack.c.l.b16 %v2517
        %v2586 = vunpack.c.l.b16 %v2518
        %v2587 = vpack.c.b16 %v2556, %v2555
        %v2588 = vpack.c.b16 %v2558, %v2557
        %v2589 = vpack.c.b16 %v2560, %v2559
        %v2590 = vpack.c.b16 %v2562, %v2561
        %v2591 = vpack.c.b16 %v2564, %v2563
        %v2592 = vpack.c.b16 %v2566, %v2565
        %v2593 = vpack.c.b16 %v2568, %v2567
        %v2594 = vpack.c.b16 %v2570, %v2569
        %v2595 = vpack.c.b16 %v2572, %v2571
        %v2596 = vpack.c.b16 %v2574, %v2573
        %v2597 = vpack.c.b16 %v2576, %v2575
        %v2598 = vpack.c.b16 %v2578, %v2577
        %v2599 = vpack.c.b16 %v2580, %v2579
        %v2600 = vpack.c.b16 %v2582, %v2581
        %v2601 = vpack.c.b16 %v2584, %v2583
        %v2602 = vpack.c.b16 %v2586, %v2585
        %2619 = vmatpush.bf16.msra.mxu0 %v2594
        %2620 = vmatpush.bf16.msra.mxu0 %v2593
        %2621 = vmatpush.bf16.msra.mxu0 %v2592
        %2622 = vmatpush.bf16.msra.mxu0 %v2591
        %2623 = vmatpush.bf16.msra.mxu0 %v2590
        %2624 = vmatpush.bf16.msra.mxu0 %v2589
        %2625 = vmatpush.bf16.msra.mxu0 %v2588
        %2626 = vmatpush.bf16.msra.mxu0 %v2587
        %2627 = vmatmul.bf16.gmra.mxu0 %v2485
        %v2628 = vpop.f32.mrf.mxu0
        %v2629 = vadd.f32 %v2521, %v2628
        %v2630 = vpop.f32.mrf.mxu0
        %v2631 = vadd.f32 %v2521, %v2630
        %2632 = vdwg.mxu0
        %2633 = vmatpush.bf16.msra.mxu0 %v2602
        %2634 = vmatpush.bf16.msra.mxu0 %v2601
        %2635 = vmatpush.bf16.msra.mxu0 %v2600
        %2636 = vmatpush.bf16.msra.mxu0 %v2599
        %2637 = vmatpush.bf16.msra.mxu0 %v2598
        %2638 = vmatpush.bf16.msra.mxu0 %v2597
        %2639 = vmatpush.bf16.msra.mxu0 %v2596
        %2640 = vmatpush.bf16.msra.mxu0 %v2595
        %2641 = vmatmul.bf16.gmra.mxu0 %v2486
        %v2642 = vpop.f32.mrf.mxu0
        %v2643 = vadd.f32 %v2629, %v2642
        %v2644 = vpop.f32.mrf.mxu0
        %v2645 = vadd.f32 %v2631, %v2644
        %2646 = vdwg.mxu0
        %s2647 = sld [smem:[#allocation8 + %s2077]]
        %v2648 = vstv %s2647
        %v2649 = vmul.f32 %v2648, %v2643
        %v2650 = vmul.f32 %v2648, %v2645
        %v2651 = vadd.f32 %v2083, %v2649
        %v2652 = vadd.f32 %v2084, %v2650
        %2653 = vst [vmem:[#allocation2] sm:$0xff] %v2651
        %2654 = vst [vmem:[#allocation2 + $0x8] sm:$0xff] %v2652
        %s2655 = smul.u32 4, %s23
        %p2656 = scmp.lt.s32.totalorder %s2655, 7
        %s2657 = scalar_select %p2656, %s2655, 7
        %s2658 = smul.addr %s2657, 2
        %s2659 = smul.addr %s2658, 8
        %s2660 = scalar_lea.vmem %s10, %s2659
        // Predicated region
        $region92: #{augmented_neural_ode_forward.1} parent=43 // pred_check
          %p2661 = pneg %p167
        $region93: #{augmented_neural_ode_forward.1} parent=43 // pred_check_branch
          %2663 = sbr.rel (%p2661) target = $region95
        $region94: #{augmented_neural_ode_forward.1} parent=43 // pred_region
          %s2664 = smul.u32 4, %s23
        $region95: #{augmented_neural_ode_forward.1} parent=43 // pred_fallthru
          _
      $region44: #{augmented_neural_ode_forward.1} parent=5 // pred_fallthru
        _
      %p2665 = scmp.le.s32.totalorder 2, %s18
      // Predicated region
      $region96: #{augmented_neural_ode_forward.1} parent=5 // pred_check
        %p2666 = pneg %p2665
      $region97: #{augmented_neural_ode_forward.1} parent=5 // pred_check_branch
        %2668 = sbr.rel (%p2666) target = $region99
      $region98: #{augmented_neural_ode_forward.1} parent=5 // pred_region
        %s2669 = ssub.s32 %s18, 2
        // Predicated region
        $region100: #{augmented_neural_ode_forward.1} parent=98 // pred_check
          %p2670 = pneg %p173
        $region101: #{augmented_neural_ode_forward.1} parent=98 // pred_check_branch
          %2672 = sbr.rel (%p2670) target = $region103
        $region102: #{augmented_neural_ode_forward.1} parent=98 // pred_region
          %s2673 = smul.u32 4, %s24
          %p2674 = scmp.lt.s32.totalorder %s2673, 7
          %s2675 = scalar_select %p2674, %s2673, 7
          %s2676 = smul.addr %s2675, 2
          %s2677 = smul.addr %s2676, 8
          %s2678 = scalar_lea.vmem %s10, %s2677
        $region103: #{augmented_neural_ode_forward.1} parent=98 // pred_fallthru
          _
      $region99: #{augmented_neural_ode_forward.1} parent=5 // pred_fallthru
        _
    $region6: #{augmented_neural_ode_forward.1} parent=1 // loop_footer
      %s22 = sadd.s32 1, %s18
    $region7: #{augmented_neural_ode_forward.1} parent=1 // loop_footer_branch
      %17 = sbr.rel target = $region3
    $region8: #{augmented_neural_ode_forward.1} parent=1 // loop_exit
      _
    %2679 = vsyncpa [#allocation7], 1
    %s2680 = scalar_lea.sflag [#allocation7], 1
    %2681 = vsyncpa %s2680, 1
    %2682 = vsyncpa [#allocation9], 1

</llo_original>
